<compile_context>
chip_gen: v7x
topology: tpu7x:2x2x1
jax: 0.10.0
libtpu: 0.0.40
codegen_flags: <defaults>
</compile_context>

<pallas_src>
import math

import jax
import jax.numpy as jnp
from jax import lax
from jax.experimental import pallas as pl
from jax.experimental.pallas import tpu as pltpu


NEG_BIG = -1e30  # finite "-inf": every processed row always has >=1 real score


def _tile(dim, target, align):
    """Largest tile <= target that divides `dim` and is a multiple of `align`;
    otherwise the full dim (block == full array dim is always legal)."""
    if dim <= target or dim % align != 0:
        return dim
    t = (target // align) * align
    while t >= align:
        if dim % t == 0:
            return t
        t -= align
    return dim


def _heads_per_block(n_head, hd):
    """Smallest head packing hb (hb | n_head) with hb*hd a multiple of 128."""
    for hb in range(1, n_head + 1):
        if n_head % hb == 0 and (hb * hd) % 128 == 0:
            return hb
    return n_head


# ---------------------------------------------------------------------------
# Kernel 1: tiled fused linear (x @ W + b) with K-reduction grid axis.
# ---------------------------------------------------------------------------
def _linear_kernel(x_ref, w_ref, b_ref, o_ref, acc_ref):
    k = pl.program_id(2)

    @pl.when(k == 0)
    def _init():
        acc_ref[...] = jnp.zeros_like(acc_ref)

    acc_ref[...] += jnp.dot(x_ref[...], w_ref[...],
                            preferred_element_type=jnp.float32)

    @pl.when(k == pl.num_programs(2) - 1)
    def _finalize():
        o_ref[...] = (acc_ref[...] + b_ref[...].astype(jnp.float32)
                      ).astype(o_ref.dtype)


def pallas_linear(x2d, w, b, *, tm_target=256, tn_target=256, tk_target=512):
    M, K = x2d.shape
    _, N = w.shape
    tm = _tile(M, tm_target, 8)     # sublane axis
    tn = _tile(N, tn_target, 128)   # lane axis
    tk = _tile(K, tk_target, 128)   # contraction axis
    grid = (M // tm, N // tn, K // tk)

    return pl.pallas_call(
        _linear_kernel,
        out_shape=jax.ShapeDtypeStruct((M, N), x2d.dtype),
        grid=grid,
        in_specs=[
            pl.BlockSpec((tm, tk), lambda i, j, k: (i, k)),
            pl.BlockSpec((tk, tn), lambda i, j, k: (k, j)),
            pl.BlockSpec((1, tn), lambda i, j, k: (0, j)),
        ],
        out_specs=pl.BlockSpec((tm, tn), lambda i, j, k: (i, j)),
        scratch_shapes=[pltpu.VMEM((tm, tn), jnp.float32)],
        compiler_params=pltpu.CompilerParams(
            dimension_semantics=("parallel", "parallel", "arbitrary"),
            vmem_limit_bytes=48 * 1024 * 1024,  # < 64 MiB v7x physical
        ),
    )(x2d, w, b.reshape(1, N))


# ---------------------------------------------------------------------------
# Kernel 2: flash-style causal multi-head attention.
#   grid = (B, n_head_blocks, n_q_tiles, n_kv_tiles); kv axis is the reduction.
# ---------------------------------------------------------------------------
def _make_flash_kernel(hb, hd, scale):
    def kernel(q_ref, k_ref, v_ref, o_ref, m_ref, l_ref, acc_ref):
        qi = pl.program_id(2)
        ki = pl.program_id(3)

        @pl.when(ki == 0)
        def _init():
            m_ref[...] = jnp.full_like(m_ref, NEG_BIG)
            l_ref[...] = jnp.zeros_like(l_ref)
            acc_ref[...] = jnp.zeros_like(acc_ref)

        def _update(apply_mask):
            q = q_ref[0]                    # (tq, hb*hd)
            k = k_ref[0]                    # (tkv, hb*hd)
            v = v_ref[0]                    # (tkv, hb*hd)
            if apply_mask:                  # built once, reused by every head
                rr = lax.broadcasted_iota(jnp.int32, (q.shape[0], k.shape[0]), 0)
                cc = lax.broadcasted_iota(jnp.int32, (q.shape[0], k.shape[0]), 1)
                keep = cc <= rr
            for h in range(hb):             # static unroll over packed heads
                sl = slice(h * hd, (h + 1) * hd)
                qh = q[:, sl] * scale       # scale folded into q (O(tq*hd))
                # q @ k^T via dot_general contraction on hd (no k.T materialized)
                s = lax.dot_general(qh, k[:, sl], (((1,), (1,)), ((), ())),
                                    preferred_element_type=jnp.float32)
                if apply_mask:              # only on the diagonal tile
                    s = jnp.where(keep, s, NEG_BIG)
                m_prev = m_ref[h]                                  # (tq, 1)
                m_new = jnp.maximum(m_prev,
                                    jnp.max(s, axis=-1, keepdims=True))
                alpha = jnp.exp(m_prev - m_new)
                p = jnp.exp(s - m_new)
                l_ref[h] = alpha * l_ref[h] + jnp.sum(p, axis=-1, keepdims=True)
                m_ref[h] = m_new
                pv = jnp.dot(p.astype(v.dtype), v[:, sl],
                             preferred_element_type=jnp.float32)
                acc_ref[:, sl] = alpha * acc_ref[:, sl] + pv

        @pl.when(ki < qi)       # strictly below the diagonal: no mask needed
        def _below():
            _update(apply_mask=False)

        @pl.when(ki == qi)      # diagonal tile: mask, then normalize & store.
        def _diag_and_store():
            _update(apply_mask=True)
            # All kv tiles contributing to this q tile (ki <= qi) are done now,
            # so finalize here: the ki > qi grid steps become complete no-ops
            # (their K/V fetches are also deduped by the clamped index_map).
            for h in range(hb):
                sl = slice(h * hd, (h + 1) * hd)
                inv = pl.reciprocal(l_ref[h], approx=False)
                o_ref[0, :, sl] = (acc_ref[:, sl] * inv).astype(o_ref.dtype)

    return kernel


def pallas_flash_attention(qkv, n_head):
    """Causal MHA reading q/k/v straight out of the packed (B, T, 3C) c_attn
    output; returns (B, T, C) with heads already merged (no transposes)."""
    B, T, C3 = qkv.shape
    C = C3 // 3
    hd = C // n_head
    scale = 1.0 / math.sqrt(hd)

    hb = _heads_per_block(n_head, hd)
    dq = hb * hd                 # lane width of one head-packed block
    n_hb = n_head // hb

    if dq % 128 == 0:
        # Lane-aligned head blocks: index the q/k/v sections of the packed qkv
        # buffer directly from the index_map (no split, no extra HBM copies).
        q_arr = k_arr = v_arr = qkv
        sec = C // dq            # k section starts at block `sec`, v at 2*sec
        off_q, off_k, off_v = 0, sec, 2 * sec
    else:
        # Tiny models (hb*hd < 128): fall back to three (B, T, C) slices so
        # every block spans the full last dim (keeps the (8,128) rule happy).
        q_arr, k_arr, v_arr = jnp.split(qkv, 3, axis=-1)
        off_q = off_k = off_v = 0

    tq = _tile(T, 128, 8)        # square q/kv tiles along the sequence
    nq = T // tq

    blk = (1, tq, dq)
    in_specs = [
        pl.BlockSpec(blk, lambda b, h, qi, ki: (b, qi, off_q + h)),
        # clamp ki -> qi: skipped upper-triangle steps re-use the resident
        # block, so no DMA is issued for tiles we never compute on.
        pl.BlockSpec(blk, lambda b, h, qi, ki: (b, jnp.minimum(ki, qi), off_k + h)),
        pl.BlockSpec(blk, lambda b, h, qi, ki: (b, jnp.minimum(ki, qi), off_v + h)),
    ]
    out_spec = pl.BlockSpec(blk, lambda b, h, qi, ki: (b, qi, h))

    kernel = _make_flash_kernel(hb, hd, scale)

    return pl.pallas_call(
        kernel,
        out_shape=jax.ShapeDtypeStruct((B, T, C), qkv.dtype),
        grid=(B, n_hb, nq, nq),
        in_specs=in_specs,
        out_specs=out_spec,
        scratch_shapes=[
            pltpu.VMEM((hb, tq, 1), jnp.float32),  # running max per head
            pltpu.VMEM((hb, tq, 1), jnp.float32),  # running denom per head
            pltpu.VMEM((tq, dq), jnp.float32),     # un-normalized output acc
        ],
        compiler_params=pltpu.CompilerParams(
            dimension_semantics=("parallel", "parallel", "parallel", "arbitrary"),
            vmem_limit_bytes=48 * 1024 * 1024,
        ),
    )(q_arr, k_arr, v_arr)


# ---------------------------------------------------------------------------
# Full module forward (glue in plain JAX, hot paths in Pallas).
# ---------------------------------------------------------------------------
def causal_self_attention(x, params, n_head):
    B, T, C = x.shape
    qkv = pallas_linear(x.reshape(B * T, C), params["w_attn"], params["b_attn"])
    y = pallas_flash_attention(qkv.reshape(B, T, 3 * C), n_head)   # (B, T, C)
    out = pallas_linear(y.reshape(B * T, C), params["w_proj"], params["b_proj"])
    return out.reshape(B, T, C)


# ---------------------------------------------------------------------------
# Pure-JAX reference for correctness check.
# ---------------------------------------------------------------------------
def reference_attention(x, params, n_head):
    B, T, C = x.shape
    hd = C // n_head
    qkv = x @ params["w_attn"] + params["b_attn"]
    q, k, v = jnp.split(qkv, 3, axis=2)
    q = q.reshape(B, T, n_head, hd).transpose(0, 2, 1, 3)
    k = k.reshape(B, T, n_head, hd).transpose(0, 2, 1, 3)
    v = v.reshape(B, T, n_head, hd).transpose(0, 2, 1, 3)
    att = (q @ jnp.swapaxes(k, -2, -1)) / math.sqrt(hd)
    mask = jnp.tril(jnp.ones((T, T), dtype=bool))
    att = jnp.where(mask[None, None], att, -jnp.inf)
    att = jax.nn.softmax(att, axis=-1)
    y = att @ v
    y = y.transpose(0, 2, 1, 3).reshape(B, T, C)
    return y @ params["w_proj"] + params["b_proj"]


def make_params(key, C):
    k1, k2, k3, k4 = jax.random.split(key, 4)
    return {
        "w_attn": 0.02 * jax.random.normal(k1, (C, 3 * C), dtype=jnp.float32),
        "b_attn": 0.02 * jax.random.normal(k2, (3 * C,), dtype=jnp.float32),
        "w_proj": 0.02 * jax.random.normal(k3, (C, C), dtype=jnp.float32),
        "b_proj": 0.02 * jax.random.normal(k4, (C,), dtype=jnp.float32),
    }


if __name__ == "__main__":
    key = jax.random.PRNGKey(0)

    # (B, T, C, n_head):
    #   config 1: lane-aligned head-packed path (hd=64 -> 2 heads per 128-lane
    #             block, q/k/v read directly from the packed qkv).
    #   config 2: small-model fallback path (full-C blocks).
    #   config 3: multiple q/kv tiles -> exercises below-diag / diagonal /
    #             skipped upper-triangle flash steps.
    configs = [
        (2, 16, 128, 2),
        (2, 8, 32, 4),
        (1, 256, 128, 2),
    ]

    fwd = jax.jit(causal_self_attention, static_argnames=("n_head",))

    for (B, T, C, n_head) in configs:
        key, kx, kp = jax.random.split(key, 3)
        x = jax.random.normal(kx, (B, T, C), dtype=jnp.float32)
        params = make_params(kp, C)

        out = jax.block_until_ready(fwd(x, params, n_head=n_head))
        ref = reference_attention(x, params, n_head)

        assert out.shape == (B, T, C)
        assert jnp.allclose(out, ref, atol=2e-3, rtol=2e-3), (
            f"mismatch vs reference for config {(B, T, C, n_head)}"
        )

    print("KERNEL_OK")
</pallas_src>

<mosaic_0001>
module attributes {stable_mosaic.version = 11 : i64} {
  func.func @_linear_kernel(%arg0: i32, %arg1: i32, %arg2: i32, %arg3: memref<32x128xf32, #tpu.memory_space<vmem>>, %arg4: memref<128x128xf32, #tpu.memory_space<vmem>>, %arg5: memref<1x128xf32, #tpu.memory_space<vmem>>, %arg6: memref<32x128xf32, #tpu.memory_space<vmem>>, %arg7: memref<32x128xf32, #tpu.memory_space<vmem>>) attributes {dimension_semantics = [#tpu.dimension_semantics<parallel>, #tpu.dimension_semantics<parallel>, #tpu.dimension_semantics<arbitrary>], iteration_bounds = array<i64: 1, 1, 1>, scalar_prefetch = 0 : i64, scratch_operands = 1 : i64, tpu.core_type = #tpu.core_type<tc>, window_params = [{transform_indices = @transform_0, window_bounds = array<i64: 32, 128>}, {transform_indices = @transform_1, window_bounds = array<i64: 128, 128>}, {transform_indices = @transform_2, window_bounds = array<i64: 1, 128>}, {transform_indices = @transform_3, window_bounds = array<i64: 32, 128>}]} {
    %c0_i32 = arith.constant 0 : i32
    %0 = arith.cmpi eq, %arg2, %c0_i32 : i32
    %1 = arith.extui %0 : i1 to i32
    %c0_i32_0 = arith.constant 0 : i32
    %2 = arith.cmpi ne, %1, %c0_i32_0 : i32
    scf.if %2 {
      %cst_10 = arith.constant 0.000000e+00 : f32
      %12 = vector.broadcast %cst_10 : f32 to vector<32x128xf32>
      %c0_11 = arith.constant 0 : index
      %c0_12 = arith.constant 0 : index
      %13 = vector.load %arg7[%c0_11, %c0_12] : memref<32x128xf32, #tpu.memory_space<vmem>>, vector<32x128xf32>
      tpu.vector_store %arg7[%c0_11, %c0_12], %12 {strides = array<i32>} : memref<32x128xf32, #tpu.memory_space<vmem>>, vector<32x128xf32>,
    } else {
    }
    %c0 = arith.constant 0 : index
    %c0_1 = arith.constant 0 : index
    %3 = vector.load %arg7[%c0, %c0_1] : memref<32x128xf32, #tpu.memory_space<vmem>>, vector<32x128xf32>
    %c0_2 = arith.constant 0 : index
    %c0_3 = arith.constant 0 : index
    %4 = vector.load %arg3[%c0_2, %c0_3] : memref<32x128xf32, #tpu.memory_space<vmem>>, vector<32x128xf32>
    %c0_4 = arith.constant 0 : index
    %c0_5 = arith.constant 0 : index
    %5 = vector.load %arg4[%c0_4, %c0_5] : memref<128x128xf32, #tpu.memory_space<vmem>>, vector<128x128xf32>
    %cst = arith.constant dense<0.000000e+00> : vector<32x128xf32>
    %6 = tpu.matmul %4, %5, %cst {dimension_numbers = #tpu.dot_dimension_numbers<[1], [0], [0], [1], [0, 0, 1, 1], [], []>} : vector<32x128xf32>, vector<128x128xf32>, vector<32x128xf32> -> vector<32x128xf32>
    %7 = arith.addf %3, %6 : vector<32x128xf32>
    %c0_6 = arith.constant 0 : index
    %c0_7 = arith.constant 0 : index
    %8 = vector.load %arg7[%c0_6, %c0_7] : memref<32x128xf32, #tpu.memory_space<vmem>>, vector<32x128xf32>
    tpu.vector_store %arg7[%c0_6, %c0_7], %7 {strides = array<i32>} : memref<32x128xf32, #tpu.memory_space<vmem>>, vector<32x128xf32>,
    %c0_i32_8 = arith.constant 0 : i32
    %9 = arith.cmpi eq, %arg2, %c0_i32_8 : i32
    %10 = arith.extui %9 : i1 to i32
    %c0_i32_9 = arith.constant 0 : i32
    %11 = arith.cmpi ne, %10, %c0_i32_9 : i32
    scf.if %11 {
      %c0_10 = arith.constant 0 : index
      %c0_11 = arith.constant 0 : index
      %12 = vector.load %arg7[%c0_10, %c0_11] : memref<32x128xf32, #tpu.memory_space<vmem>>, vector<32x128xf32>
      %c0_12 = arith.constant 0 : index
      %c0_13 = arith.constant 0 : index
      %13 = vector.load %arg5[%c0_12, %c0_13] : memref<1x128xf32, #tpu.memory_space<vmem>>, vector<1x128xf32>
      %14 = vector.broadcast %13 : vector<1x128xf32> to vector<32x128xf32>
      %15 = arith.addf %12, %14 : vector<32x128xf32>
      %c0_14 = arith.constant 0 : index
      %c0_15 = arith.constant 0 : index
      %16 = vector.load %arg6[%c0_14, %c0_15] : memref<32x128xf32, #tpu.memory_space<vmem>>, vector<32x128xf32>
      tpu.vector_store %arg6[%c0_14, %c0_15], %15 {strides = array<i32>} : memref<32x128xf32, #tpu.memory_space<vmem>>, vector<32x128xf32>,
    } else {
    }
    return
  }
  func.func @transform_0(%arg0: i32, %arg1: i32, %arg2: i32) -> (i32, i32) {
    %c0_i32 = arith.constant 0 : i32
    return %arg0, %arg2 : i32, i32
  }
  func.func @transform_1(%arg0: i32, %arg1: i32, %arg2: i32) -> (i32, i32) {
    %c0_i32 = arith.constant 0 : i32
    return %arg2, %arg1 : i32, i32
  }
  func.func @transform_2(%arg0: i32, %arg1: i32, %arg2: i32) -> (i32, i32) {
    %c0_i32 = arith.constant 0 : i32
    %c0_i32_0 = arith.constant 0 : i32
    return %c0_i32, %arg1 : i32, i32
  }
  func.func @transform_3(%arg0: i32, %arg1: i32, %arg2: i32) -> (i32, i32) {
    %c0_i32 = arith.constant 0 : i32
    return %arg0, %arg1 : i32, i32
  }
}

module attributes {stable_mosaic.version = 11 : i64} {
  func.func @_linear_kernel(%arg0: i32, %arg1: i32, %arg2: i32, %arg3: memref<32x128xf32, #tpu.memory_space<vmem>>, %arg4: memref<128x128xf32, #tpu.memory_space<vmem>>, %arg5: memref<1x128xf32, #tpu.memory_space<vmem>>, %arg6: memref<32x128xf32, #tpu.memory_space<vmem>>, %arg7: memref<32x128xf32, #tpu.memory_space<vmem>>) attributes {dimension_semantics = [#tpu.dimension_semantics<parallel>, #tpu.dimension_semantics<parallel>, #tpu.dimension_semantics<arbitrary>], iteration_bounds = array<i64: 1, 3, 1>, scalar_prefetch = 0 : i64, scratch_operands = 1 : i64, tpu.core_type = #tpu.core_type<tc>, window_params = [{transform_indices = @transform_0, window_bounds = array<i64: 32, 128>}, {transform_indices = @transform_1, window_bounds = array<i64: 128, 128>}, {transform_indices = @transform_2, window_bounds = array<i64: 1, 128>}, {transform_indices = @transform_3, window_bounds = array<i64: 32, 128>}]} {
    %c0_i32 = arith.constant 0 : i32
    %0 = arith.cmpi eq, %arg2, %c0_i32 : i32
    %1 = arith.extui %0 : i1 to i32
    %c0_i32_0 = arith.constant 0 : i32
    %2 = arith.cmpi ne, %1, %c0_i32_0 : i32
    scf.if %2 {
      %cst_10 = arith.constant 0.000000e+00 : f32
      %12 = vector.broadcast %cst_10 : f32 to vector<32x128xf32>
      %c0_11 = arith.constant 0 : index
      %c0_12 = arith.constant 0 : index
      %13 = vector.load %arg7[%c0_11, %c0_12] : memref<32x128xf32, #tpu.memory_space<vmem>>, vector<32x128xf32>
      tpu.vector_store %arg7[%c0_11, %c0_12], %12 {strides = array<i32>} : memref<32x128xf32, #tpu.memory_space<vmem>>, vector<32x128xf32>,
    } else {
    }
    %c0 = arith.constant 0 : index
    %c0_1 = arith.constant 0 : index
    %3 = vector.load %arg7[%c0, %c0_1] : memref<32x128xf32, #tpu.memory_space<vmem>>, vector<32x128xf32>
    %c0_2 = arith.constant 0 : index
    %c0_3 = arith.constant 0 : index
    %4 = vector.load %arg3[%c0_2, %c0_3] : memref<32x128xf32, #tpu.memory_space<vmem>>, vector<32x128xf32>
    %c0_4 = arith.constant 0 : index
    %c0_5 = arith.constant 0 : index
    %5 = vector.load %arg4[%c0_4, %c0_5] : memref<128x128xf32, #tpu.memory_space<vmem>>, vector<128x128xf32>
    %cst = arith.constant dense<0.000000e+00> : vector<32x128xf32>
    %6 = tpu.matmul %4, %5, %cst {dimension_numbers = #tpu.dot_dimension_numbers<[1], [0], [0], [1], [0, 0, 1, 1], [], []>} : vector<32x128xf32>, vector<128x128xf32>, vector<32x128xf32> -> vector<32x128xf32>
    %7 = arith.addf %3, %6 : vector<32x128xf32>
    %c0_6 = arith.constant 0 : index
    %c0_7 = arith.constant 0 : index
    %8 = vector.load %arg7[%c0_6, %c0_7] : memref<32x128xf32, #tpu.memory_space<vmem>>, vector<32x128xf32>
    tpu.vector_store %arg7[%c0_6, %c0_7], %7 {strides = array<i32>} : memref<32x128xf32, #tpu.memory_space<vmem>>, vector<32x128xf32>,
    %c0_i32_8 = arith.constant 0 : i32
    %9 = arith.cmpi eq, %arg2, %c0_i32_8 : i32
    %10 = arith.extui %9 : i1 to i32
    %c0_i32_9 = arith.constant 0 : i32
    %11 = arith.cmpi ne, %10, %c0_i32_9 : i32
    scf.if %11 {
      %c0_10 = arith.constant 0 : index
      %c0_11 = arith.constant 0 : index
      %12 = vector.load %arg7[%c0_10, %c0_11] : memref<32x128xf32, #tpu.memory_space<vmem>>, vector<32x128xf32>
      %c0_12 = arith.constant 0 : index
      %c0_13 = arith.constant 0 : index
      %13 = vector.load %arg5[%c0_12, %c0_13] : memref<1x128xf32, #tpu.memory_space<vmem>>, vector<1x128xf32>
      %14 = vector.broadcast %13 : vector<1x128xf32> to vector<32x128xf32>
      %15 = arith.addf %12, %14 : vector<32x128xf32>
      %c0_14 = arith.constant 0 : index
      %c0_15 = arith.constant 0 : index
      %16 = vector.load %arg6[%c0_14, %c0_15] : memref<32x128xf32, #tpu.memory_space<vmem>>, vector<32x128xf32>
      tpu.vector_store %arg6[%c0_14, %c0_15], %15 {strides = array<i32>} : memref<32x128xf32, #tpu.memory_space<vmem>>, vector<32x128xf32>,
    } else {
    }
    return
  }
  func.func @transform_0(%arg0: i32, %arg1: i32, %arg2: i32) -> (i32, i32) {
    %c0_i32 = arith.constant 0 : i32
    return %arg0, %arg2 : i32, i32
  }
  func.func @transform_1(%arg0: i32, %arg1: i32, %arg2: i32) -> (i32, i32) {
    %c0_i32 = arith.constant 0 : i32
    return %arg2, %arg1 : i32, i32
  }
  func.func @transform_2(%arg0: i32, %arg1: i32, %arg2: i32) -> (i32, i32) {
    %c0_i32 = arith.constant 0 : i32
    %c0_i32_0 = arith.constant 0 : i32
    return %c0_i32, %arg1 : i32, i32
  }
  func.func @transform_3(%arg0: i32, %arg1: i32, %arg2: i32) -> (i32, i32) {
    %c0_i32 = arith.constant 0 : i32
    return %arg0, %arg1 : i32, i32
  }
}

module attributes {stable_mosaic.version = 11 : i64} {
  func.func @kernel(%arg0: i32, %arg1: i32, %arg2: i32, %arg3: i32, %arg4: memref<1x16x128xf32, #tpu.memory_space<vmem>>, %arg5: memref<1x16x128xf32, #tpu.memory_space<vmem>>, %arg6: memref<1x16x128xf32, #tpu.memory_space<vmem>>, %arg7: memref<1x16x128xf32, #tpu.memory_space<vmem>>, %arg8: memref<2x16x1xf32, #tpu.memory_space<vmem>>, %arg9: memref<2x16x1xf32, #tpu.memory_space<vmem>>, %arg10: memref<16x128xf32, #tpu.memory_space<vmem>>) attributes {dimension_semantics = [#tpu.dimension_semantics<parallel>, #tpu.dimension_semantics<parallel>, #tpu.dimension_semantics<parallel>, #tpu.dimension_semantics<arbitrary>], iteration_bounds = array<i64: 2, 1, 1, 1>, scalar_prefetch = 0 : i64, scratch_operands = 3 : i64, tpu.core_type = #tpu.core_type<tc>, window_params = [{transform_indices = @transform_0, window_bounds = array<i64: 1, 16, 128>}, {transform_indices = @transform_1, window_bounds = array<i64: 1, 16, 128>}, {transform_indices = @transform_2, window_bounds = array<i64: 1, 16, 128>}, {transform_indices = @transform_3, window_bounds = array<i64: 1, 16, 128>}]} {
    %c0_i32 = arith.constant 0 : i32
    %0 = arith.cmpi eq, %arg3, %c0_i32 : i32
    %1 = arith.extui %0 : i1 to i32
    %c0_i32_0 = arith.constant 0 : i32
    %2 = arith.cmpi ne, %1, %c0_i32_0 : i32
    scf.if %2 {
      %cst = arith.constant -1.000000e+30 : f32
      %9 = vector.broadcast %cst : f32 to vector<2x16x1xf32>
      %c0 = arith.constant 0 : index
      %c0_3 = arith.constant 0 : index
      %c0_4 = arith.constant 0 : index
      %10 = vector.load %arg8[%c0, %c0_3, %c0_4] : memref<2x16x1xf32, #tpu.memory_space<vmem>>, vector<2x16x1xf32>
      tpu.vector_store %arg8[%c0, %c0_3, %c0_4], %9 {strides = array<i32>} : memref<2x16x1xf32, #tpu.memory_space<vmem>>, vector<2x16x1xf32>,
      %cst_5 = arith.constant 0.000000e+00 : f32
      %11 = vector.broadcast %cst_5 : f32 to vector<2x16x1xf32>
      %c0_6 = arith.constant 0 : index
      %c0_7 = arith.constant 0 : index
      %c0_8 = arith.constant 0 : index
      %12 = vector.load %arg9[%c0_6, %c0_7, %c0_8] : memref<2x16x1xf32, #tpu.memory_space<vmem>>, vector<2x16x1xf32>
      tpu.vector_store %arg9[%c0_6, %c0_7, %c0_8], %11 {strides = array<i32>} : memref<2x16x1xf32, #tpu.memory_space<vmem>>, vector<2x16x1xf32>,
      %cst_9 = arith.constant 0.000000e+00 : f32
      %13 = vector.broadcast %cst_9 : f32 to vector<16x128xf32>
      %c0_10 = arith.constant 0 : index
      %c0_11 = arith.constant 0 : index
      %14 = vector.load %arg10[%c0_10, %c0_11] : memref<16x128xf32, #tpu.memory_space<vmem>>, vector<16x128xf32>
      tpu.vector_store %arg10[%c0_10, %c0_11], %13 {strides = array<i32>} : memref<16x128xf32, #tpu.memory_space<vmem>>, vector<16x128xf32>,
    } else {
    }
    %3 = arith.cmpi slt, %arg3, %arg2 : i32
    %4 = arith.extui %3 : i1 to i32
    %c0_i32_1 = arith.constant 0 : i32
    %5 = arith.cmpi ne, %4, %c0_i32_1 : i32
    scf.if %5 {
      %c0 = arith.constant 0 : index
      %c0_3 = arith.constant 0 : index
      %c0_4 = arith.constant 0 : index
      %9 = vector.load %arg4[%c0, %c0_3, %c0_4] : memref<1x16x128xf32, #tpu.memory_space<vmem>>, vector<1x16x128xf32>
      %10 = vector.shape_cast %9 : vector<1x16x128xf32> to vector<16x128xf32>
      %c0_5 = arith.constant 0 : index
      %c0_6 = arith.constant 0 : index
      %c0_7 = arith.constant 0 : index
      %11 = vector.load %arg5[%c0_5, %c0_6, %c0_7] : memref<1x16x128xf32, #tpu.memory_space<vmem>>, vector<1x16x128xf32>
      %12 = vector.shape_cast %11 : vector<1x16x128xf32> to vector<16x128xf32>
      %c0_8 = arith.constant 0 : index
      %c0_9 = arith.constant 0 : index
      %c0_10 = arith.constant 0 : index
      %13 = vector.load %arg6[%c0_8, %c0_9, %c0_10] : memref<1x16x128xf32, #tpu.memory_space<vmem>>, vector<1x16x128xf32>
      %14 = vector.shape_cast %13 : vector<1x16x128xf32> to vector<16x128xf32>
      %15 = vector.extract_strided_slice %10 {offsets = [0, 0], sizes = [16, 64], strides = [1, 1]} : vector<16x128xf32> to vector<16x64xf32>
      %cst = arith.constant 1.250000e-01 : f32
      %16 = vector.broadcast %cst : f32 to vector<16x64xf32>
      %17 = arith.mulf %15, %16 : vector<16x64xf32>
      %18 = vector.extract_strided_slice %12 {offsets = [0, 0], sizes = [16, 64], strides = [1, 1]} : vector<16x128xf32> to vector<16x64xf32>
      %cst_11 = arith.constant dense<0.000000e+00> : vector<16x16xf32>
      %19 = tpu.matmul %17, %18, %cst_11 {dimension_numbers = #tpu.dot_dimension_numbers<[1], [1], [0], [0], [0, 0, 1, 0], [], []>} : vector<16x64xf32>, vector<16x64xf32>, vector<16x16xf32> -> vector<16x16xf32>
      %c0_12 = arith.constant 0 : index
      %c0_13 = arith.constant 0 : index
      %c0_14 = arith.constant 0 : index
      %20 = vector.load %arg8[%c0_12, %c0_13, %c0_14] : memref<2x16x1xf32, #tpu.memory_space<vmem>>, vector<1x16x1xf32>
      %21 = vector.shape_cast %20 : vector<1x16x1xf32> to vector<16x1xf32>
      %cst_15 = arith.constant dense<0xFF800000> : vector<16xf32>
      %22 = vector.multi_reduction <maximumf>, %19, %cst_15 [1] : vector<16x16xf32> to vector<16xf32>
      %23 = vector.shape_cast %22 : vector<16xf32> to vector<16x1xf32>
      %24 = arith.maximumf %21, %23 : vector<16x1xf32>
      %25 = arith.subf %21, %24 : vector<16x1xf32>
      %26 = math.exp %25 : vector<16x1xf32>
      %27 = vector.broadcast %24 : vector<16x1xf32> to vector<16x16xf32>
      %28 = arith.subf %19, %27 : vector<16x16xf32>
      %29 = math.exp %28 : vector<16x16xf32>
      %c0_16 = arith.constant 0 : index
      %c0_17 = arith.constant 0 : index
      %c0_18 = arith.constant 0 : index
      %30 = vector.load %arg9[%c0_16, %c0_17, %c0_18] : memref<2x16x1xf32, #tpu.memory_space<vmem>>, vector<1x16x1xf32>
      %31 = vector.shape_cast %30 : vector<1x16x1xf32> to vector<16x1xf32>
      %32 = arith.mulf %26, %31 : vector<16x1xf32>
      %cst_19 = arith.constant dense<0.000000e+00> : vector<16xf32>
      %33 = vector.multi_reduction <add>, %29, %cst_19 [1] : vector<16x16xf32> to vector<16xf32>
      %34 = vector.shape_cast %33 : vector<16xf32> to vector<16x1xf32>
      %35 = arith.addf %32, %34 : vector<16x1xf32>
      %c0_20 = arith.constant 0 : index
      %c0_21 = arith.constant 0 : index
      %c0_22 = arith.constant 0 : index
      %36 = vector.load %arg9[%c0_20, %c0_21, %c0_22] : memref<2x16x1xf32, #tpu.memory_space<vmem>>, vector<1x16x1xf32>
      %37 = vector.shape_cast %36 : vector<1x16x1xf32> to vector<16x1xf32>
      %38 = vector.shape_cast %35 : vector<16x1xf32> to vector<1x16x1xf32>
      tpu.vector_store %arg9[%c0_20, %c0_21, %c0_22], %38 {strides = array<i32>} : memref<2x16x1xf32, #tpu.memory_space<vmem>>, vector<1x16x1xf32>,
      %c0_23 = arith.constant 0 : index
      %c0_24 = arith.constant 0 : index
      %c0_25 = arith.constant 0 : index
      %39 = vector.load %arg8[%c0_23, %c0_24, %c0_25] : memref<2x16x1xf32, #tpu.memory_space<vmem>>, vector<1x16x1xf32>
      %40 = vector.shape_cast %39 : vector<1x16x1xf32> to vector<16x1xf32>
      %41 = vector.shape_cast %24 : vector<16x1xf32> to vector<1x16x1xf32>
      tpu.vector_store %arg8[%c0_23, %c0_24, %c0_25], %41 {strides = array<i32>} : memref<2x16x1xf32, #tpu.memory_space<vmem>>, vector<1x16x1xf32>,
      %42 = vector.extract_strided_slice %14 {offsets = [0, 0], sizes = [16, 64], strides = [1, 1]} : vector<16x128xf32> to vector<16x64xf32>
      %cst_26 = arith.constant dense<0.000000e+00> : vector<16x64xf32>
      %43 = tpu.matmul %29, %42, %cst_26 {dimension_numbers = #tpu.dot_dimension_numbers<[1], [0], [0], [1], [0, 0, 1, 1], [], []>} : vector<16x16xf32>, vector<16x64xf32>, vector<16x64xf32> -> vector<16x64xf32>
      %c0_27 = arith.constant 0 : index
      %c0_28 = arith.constant 0 : index
      %44 = vector.load %arg10[%c0_27, %c0_28] : memref<16x128xf32, #tpu.memory_space<vmem>>, vector<16x64xf32>
      %45 = vector.broadcast %26 : vector<16x1xf32> to vector<16x64xf32>
      %46 = arith.mulf %45, %44 : vector<16x64xf32>
      %47 = arith.addf %46, %43 : vector<16x64xf32>
      %c0_29 = arith.constant 0 : index
      %c0_30 = arith.constant 0 : index
      %48 = vector.load %arg10[%c0_29, %c0_30] : memref<16x128xf32, #tpu.memory_space<vmem>>, vector<16x64xf32>
      tpu.vector_store %arg10[%c0_29, %c0_30], %47 {strides = array<i32>} : memref<16x128xf32, #tpu.memory_space<vmem>>, vector<16x64xf32>,
      %49 = vector.extract_strided_slice %10 {offsets = [0, 64], sizes = [16, 64], strides = [1, 1]} : vector<16x128xf32> to vector<16x64xf32>
      %cst_31 = arith.constant 1.250000e-01 : f32
      %50 = vector.broadcast %cst_31 : f32 to vector<16x64xf32>
      %51 = arith.mulf %49, %50 : vector<16x64xf32>
      %52 = vector.extract_strided_slice %12 {offsets = [0, 64], sizes = [16, 64], strides = [1, 1]} : vector<16x128xf32> to vector<16x64xf32>
      %cst_32 = arith.constant dense<0.000000e+00> : vector<16x16xf32>
      %53 = tpu.matmul %51, %52, %cst_32 {dimension_numbers = #tpu.dot_dimension_numbers<[1], [1], [0], [0], [0, 0, 1, 0], [], []>} : vector<16x64xf32>, vector<16x64xf32>, vector<16x16xf32> -> vector<16x16xf32>
      %c1 = arith.constant 1 : index
      %c0_33 = arith.constant 0 : index
      %c0_34 = arith.constant 0 : index
      %54 = vector.load %arg8[%c1, %c0_33, %c0_34] : memref<2x16x1xf32, #tpu.memory_space<vmem>>, vector<1x16x1xf32>
      %55 = vector.shape_cast %54 : vector<1x16x1xf32> to vector<16x1xf32>
      %cst_35 = arith.constant dense<0xFF800000> : vector<16xf32>
      %56 = vector.multi_reduction <maximumf>, %53, %cst_35 [1] : vector<16x16xf32> to vector<16xf32>
      %57 = vector.shape_cast %56 : vector<16xf32> to vector<16x1xf32>
      %58 = arith.maximumf %55, %57 : vector<16x1xf32>
      %59 = arith.subf %55, %58 : vector<16x1xf32>
      %60 = math.exp %59 : vector<16x1xf32>
      %61 = vector.broadcast %58 : vector<16x1xf32> to vector<16x16xf32>
      %62 = arith.subf %53, %61 : vector<16x16xf32>
      %63 = math.exp %62 : vector<16x16xf32>
      %c1_36 = arith.constant 1 : index
      %c0_37 = arith.constant 0 : index
      %c0_38 = arith.constant 0 : index
      %64 = vector.load %arg9[%c1_36, %c0_37, %c0_38] : memref<2x16x1xf32, #tpu.memory_space<vmem>>, vector<1x16x1xf32>
      %65 = vector.shape_cast %64 : vector<1x16x1xf32> to vector<16x1xf32>
      %66 = arith.mulf %60, %65 : vector<16x1xf32>
      %cst_39 = arith.constant dense<0.000000e+00> : vector<16xf32>
      %67 = vector.multi_reduction <add>, %63, %cst_39 [1] : vector<16x16xf32> to vector<16xf32>
      %68 = vector.shape_cast %67 : vector<16xf32> to vector<16x1xf32>
      %69 = arith.addf %66, %68 : vector<16x1xf32>
      %c1_40 = arith.constant 1 : index
      %c0_41 = arith.constant 0 : index
      %c0_42 = arith.constant 0 : index
      %70 = vector.load %arg9[%c1_40, %c0_41, %c0_42] : memref<2x16x1xf32, #tpu.memory_space<vmem>>, vector<1x16x1xf32>
      %71 = vector.shape_cast %70 : vector<1x16x1xf32> to vector<16x1xf32>
      %72 = vector.shape_cast %69 : vector<16x1xf32> to vector<1x16x1xf32>
      tpu.vector_store %arg9[%c1_40, %c0_41, %c0_42], %72 {strides = array<i32>} : memref<2x16x1xf32, #tpu.memory_space<vmem>>, vector<1x16x1xf32>,
      %c1_43 = arith.constant 1 : index
      %c0_44 = arith.constant 0 : index
      %c0_45 = arith.constant 0 : index
      %73 = vector.load %arg8[%c1_43, %c0_44, %c0_45] : memref<2x16x1xf32, #tpu.memory_space<vmem>>, vector<1x16x1xf32>
      %74 = vector.shape_cast %73 : vector<1x16x1xf32> to vector<16x1xf32>
      %75 = vector.shape_cast %58 : vector<16x1xf32> to vector<1x16x1xf32>
      tpu.vector_store %arg8[%c1_43, %c0_44, %c0_45], %75 {strides = array<i32>} : memref<2x16x1xf32, #tpu.memory_space<vmem>>, vector<1x16x1xf32>,
      %76 = vector.extract_strided_slice %14 {offsets = [0, 64], sizes = [16, 64], strides = [1, 1]} : vector<16x128xf32> to vector<16x64xf32>
      %cst_46 = arith.constant dense<0.000000e+00> : vector<16x64xf32>
      %77 = tpu.matmul %63, %76, %cst_46 {dimension_numbers = #tpu.dot_dimension_numbers<[1], [0], [0], [1], [0, 0, 1, 1], [], []>} : vector<16x16xf32>, vector<16x64xf32>, vector<16x64xf32> -> vector<16x64xf32>
      %c0_47 = arith.constant 0 : index
      %c64 = arith.constant 64 : index
      %78 = vector.load %arg10[%c0_47, %c64] : memref<16x128xf32, #tpu.memory_space<vmem>>, vector<16x64xf32>
      %79 = vector.broadcast %60 : vector<16x1xf32> to vector<16x64xf32>
      %80 = arith.mulf %79, %78 : vector<16x64xf32>
      %81 = arith.addf %80, %77 : vector<16x64xf32>
      %c0_48 = arith.constant 0 : index
      %c64_49 = arith.constant 64 : index
      %82 = vector.load %arg10[%c0_48, %c64_49] : memref<16x128xf32, #tpu.memory_space<vmem>>, vector<16x64xf32>
      tpu.vector_store %arg10[%c0_48, %c64_49], %81 {strides = array<i32>} : memref<16x128xf32, #tpu.memory_space<vmem>>, vector<16x64xf32>,
    } else {
    }
    %6 = arith.cmpi eq, %arg3, %arg2 : i32
    %7 = arith.extui %6 : i1 to i32
    %c0_i32_2 = arith.constant 0 : i32
    %8 = arith.cmpi ne, %7, %c0_i32_2 : i32
    scf.if %8 {
      %c0 = arith.constant 0 : index
      %c0_3 = arith.constant 0 : index
      %c0_4 = arith.constant 0 : index
      %9 = vector.load %arg4[%c0, %c0_3, %c0_4] : memref<1x16x128xf32, #tpu.memory_space<vmem>>, vector<1x16x128xf32>
      %10 = vector.shape_cast %9 : vector<1x16x128xf32> to vector<16x128xf32>
      %c0_5 = arith.constant 0 : index
      %c0_6 = arith.constant 0 : index
      %c0_7 = arith.constant 0 : index
      %11 = vector.load %arg5[%c0_5, %c0_6, %c0_7] : memref<1x16x128xf32, #tpu.memory_space<vmem>>, vector<1x16x128xf32>
      %12 = vector.shape_cast %11 : vector<1x16x128xf32> to vector<16x128xf32>
      %c0_8 = arith.constant 0 : index
      %c0_9 = arith.constant 0 : index
      %c0_10 = arith.constant 0 : index
      %13 = vector.load %arg6[%c0_8, %c0_9, %c0_10] : memref<1x16x128xf32, #tpu.memory_space<vmem>>, vector<1x16x128xf32>
      %14 = vector.shape_cast %13 : vector<1x16x128xf32> to vector<16x128xf32>
      %15 = tpu.iota {dimensions = array<i32: 0>} : vector<16x16xi32>
      %16 = tpu.iota {dimensions = array<i32: 1>} : vector<16x16xi32>
      %17 = arith.cmpi sle, %16, %15 : vector<16x16xi32>
      %18 = vector.extract_strided_slice %10 {offsets = [0, 0], sizes = [16, 64], strides = [1, 1]} : vector<16x128xf32> to vector<16x64xf32>
      %cst = arith.constant 1.250000e-01 : f32
      %19 = vector.broadcast %cst : f32 to vector<16x64xf32>
      %20 = arith.mulf %18, %19 : vector<16x64xf32>
      %21 = vector.extract_strided_slice %12 {offsets = [0, 0], sizes = [16, 64], strides = [1, 1]} : vector<16x128xf32> to vector<16x64xf32>
      %cst_11 = arith.constant dense<0.000000e+00> : vector<16x16xf32>
      %22 = tpu.matmul %20, %21, %cst_11 {dimension_numbers = #tpu.dot_dimension_numbers<[1], [1], [0], [0], [0, 0, 1, 0], [], []>} : vector<16x64xf32>, vector<16x64xf32>, vector<16x16xf32> -> vector<16x16xf32>
      %cst_12 = arith.constant -1.000000e+30 : f32
      %23 = vector.broadcast %cst_12 : f32 to vector<16x16xf32>
      %24 = arith.select %17, %22, %23 : vector<16x16xi1>, vector<16x16xf32>
      %c0_13 = arith.constant 0 : index
      %c0_14 = arith.constant 0 : index
      %c0_15 = arith.constant 0 : index
      %25 = vector.load %arg8[%c0_13, %c0_14, %c0_15] : memref<2x16x1xf32, #tpu.memory_space<vmem>>, vector<1x16x1xf32>
      %26 = vector.shape_cast %25 : vector<1x16x1xf32> to vector<16x1xf32>
      %cst_16 = arith.constant dense<0xFF800000> : vector<16xf32>
      %27 = vector.multi_reduction <maximumf>, %24, %cst_16 [1] : vector<16x16xf32> to vector<16xf32>
      %28 = vector.shape_cast %27 : vector<16xf32> to vector<16x1xf32>
      %29 = arith.maximumf %26, %28 : vector<16x1xf32>
      %30 = arith.subf %26, %29 : vector<16x1xf32>
      %31 = math.exp %30 : vector<16x1xf32>
      %32 = vector.broadcast %29 : vector<16x1xf32> to vector<16x16xf32>
      %33 = arith.subf %24, %32 : vector<16x16xf32>
      %34 = math.exp %33 : vector<16x16xf32>
      %c0_17 = arith.constant 0 : index
      %c0_18 = arith.constant 0 : index
      %c0_19 = arith.constant 0 : index
      %35 = vector.load %arg9[%c0_17, %c0_18, %c0_19] : memref<2x16x1xf32, #tpu.memory_space<vmem>>, vector<1x16x1xf32>
      %36 = vector.shape_cast %35 : vector<1x16x1xf32> to vector<16x1xf32>
      %37 = arith.mulf %31, %36 : vector<16x1xf32>
      %cst_20 = arith.constant dense<0.000000e+00> : vector<16xf32>
      %38 = vector.multi_reduction <add>, %34, %cst_20 [1] : vector<16x16xf32> to vector<16xf32>
      %39 = vector.shape_cast %38 : vector<16xf32> to vector<16x1xf32>
      %40 = arith.addf %37, %39 : vector<16x1xf32>
      %c0_21 = arith.constant 0 : index
      %c0_22 = arith.constant 0 : index
      %c0_23 = arith.constant 0 : index
      %41 = vector.load %arg9[%c0_21, %c0_22, %c0_23] : memref<2x16x1xf32, #tpu.memory_space<vmem>>, vector<1x16x1xf32>
      %42 = vector.shape_cast %41 : vector<1x16x1xf32> to vector<16x1xf32>
      %43 = vector.shape_cast %40 : vector<16x1xf32> to vector<1x16x1xf32>
      tpu.vector_store %arg9[%c0_21, %c0_22, %c0_23], %43 {strides = array<i32>} : memref<2x16x1xf32, #tpu.memory_space<vmem>>, vector<1x16x1xf32>,
      %c0_24 = arith.constant 0 : index
      %c0_25 = arith.constant 0 : index
      %c0_26 = arith.constant 0 : index
      %44 = vector.load %arg8[%c0_24, %c0_25, %c0_26] : memref<2x16x1xf32, #tpu.memory_space<vmem>>, vector<1x16x1xf32>
      %45 = vector.shape_cast %44 : vector<1x16x1xf32> to vector<16x1xf32>
      %46 = vector.shape_cast %29 : vector<16x1xf32> to vector<1x16x1xf32>
      tpu.vector_store %arg8[%c0_24, %c0_25, %c0_26], %46 {strides = array<i32>} : memref<2x16x1xf32, #tpu.memory_space<vmem>>, vector<1x16x1xf32>,
      %47 = vector.extract_strided_slice %14 {offsets = [0, 0], sizes = [16, 64], strides = [1, 1]} : vector<16x128xf32> to vector<16x64xf32>
      %cst_27 = arith.constant dense<0.000000e+00> : vector<16x64xf32>
      %48 = tpu.matmul %34, %47, %cst_27 {dimension_numbers = #tpu.dot_dimension_numbers<[1], [0], [0], [1], [0, 0, 1, 1], [], []>} : vector<16x16xf32>, vector<16x64xf32>, vector<16x64xf32> -> vector<16x64xf32>
      %c0_28 = arith.constant 0 : index
      %c0_29 = arith.constant 0 : index
      %49 = vector.load %arg10[%c0_28, %c0_29] : memref<16x128xf32, #tpu.memory_space<vmem>>, vector<16x64xf32>
      %50 = vector.broadcast %31 : vector<16x1xf32> to vector<16x64xf32>
      %51 = arith.mulf %50, %49 : vector<16x64xf32>
      %52 = arith.addf %51, %48 : vector<16x64xf32>
      %c0_30 = arith.constant 0 : index
      %c0_31 = arith.constant 0 : index
      %53 = vector.load %arg10[%c0_30, %c0_31] : memref<16x128xf32, #tpu.memory_space<vmem>>, vector<16x64xf32>
      tpu.vector_store %arg10[%c0_30, %c0_31], %52 {strides = array<i32>} : memref<16x128xf32, #tpu.memory_space<vmem>>, vector<16x64xf32>,
      %54 = vector.extract_strided_slice %10 {offsets = [0, 64], sizes = [16, 64], strides = [1, 1]} : vector<16x128xf32> to vector<16x64xf32>
      %cst_32 = arith.constant 1.250000e-01 : f32
      %55 = vector.broadcast %cst_32 : f32 to vector<16x64xf32>
      %56 = arith.mulf %54, %55 : vector<16x64xf32>
      %57 = vector.extract_strided_slice %12 {offsets = [0, 64], sizes = [16, 64], strides = [1, 1]} : vector<16x128xf32> to vector<16x64xf32>
      %cst_33 = arith.constant dense<0.000000e+00> : vector<16x16xf32>
      %58 = tpu.matmul %56, %57, %cst_33 {dimension_numbers = #tpu.dot_dimension_numbers<[1], [1], [0], [0], [0, 0, 1, 0], [], []>} : vector<16x64xf32>, vector<16x64xf32>, vector<16x16xf32> -> vector<16x16xf32>
      %cst_34 = arith.constant -1.000000e+30 : f32
      %59 = vector.broadcast %cst_34 : f32 to vector<16x16xf32>
      %60 = arith.select %17, %58, %59 : vector<16x16xi1>, vector<16x16xf32>
      %c1 = arith.constant 1 : index
      %c0_35 = arith.constant 0 : index
      %c0_36 = arith.constant 0 : index
      %61 = vector.load %arg8[%c1, %c0_35, %c0_36] : memref<2x16x1xf32, #tpu.memory_space<vmem>>, vector<1x16x1xf32>
      %62 = vector.shape_cast %61 : vector<1x16x1xf32> to vector<16x1xf32>
      %cst_37 = arith.constant dense<0xFF800000> : vector<16xf32>
      %63 = vector.multi_reduction <maximumf>, %60, %cst_37 [1] : vector<16x16xf32> to vector<16xf32>
      %64 = vector.shape_cast %63 : vector<16xf32> to vector<16x1xf32>
      %65 = arith.maximumf %62, %64 : vector<16x1xf32>
      %66 = arith.subf %62, %65 : vector<16x1xf32>
      %67 = math.exp %66 : vector<16x1xf32>
      %68 = vector.broadcast %65 : vector<16x1xf32> to vector<16x16xf32>
      %69 = arith.subf %60, %68 : vector<16x16xf32>
      %70 = math.exp %69 : vector<16x16xf32>
      %c1_38 = arith.constant 1 : index
      %c0_39 = arith.constant 0 : index
      %c0_40 = arith.constant 0 : index
      %71 = vector.load %arg9[%c1_38, %c0_39, %c0_40] : memref<2x16x1xf32, #tpu.memory_space<vmem>>, vector<1x16x1xf32>
      %72 = vector.shape_cast %71 : vector<1x16x1xf32> to vector<16x1xf32>
      %73 = arith.mulf %67, %72 : vector<16x1xf32>
      %cst_41 = arith.constant dense<0.000000e+00> : vector<16xf32>
      %74 = vector.multi_reduction <add>, %70, %cst_41 [1] : vector<16x16xf32> to vector<16xf32>
      %75 = vector.shape_cast %74 : vector<16xf32> to vector<16x1xf32>
      %76 = arith.addf %73, %75 : vector<16x1xf32>
      %c1_42 = arith.constant 1 : index
      %c0_43 = arith.constant 0 : index
      %c0_44 = arith.constant 0 : index
      %77 = vector.load %arg9[%c1_42, %c0_43, %c0_44] : memref<2x16x1xf32, #tpu.memory_space<vmem>>, vector<1x16x1xf32>
      %78 = vector.shape_cast %77 : vector<1x16x1xf32> to vector<16x1xf32>
      %79 = vector.shape_cast %76 : vector<16x1xf32> to vector<1x16x1xf32>
      tpu.vector_store %arg9[%c1_42, %c0_43, %c0_44], %79 {strides = array<i32>} : memref<2x16x1xf32, #tpu.memory_space<vmem>>, vector<1x16x1xf32>,
      %c1_45 = arith.constant 1 : index
      %c0_46 = arith.constant 0 : index
      %c0_47 = arith.constant 0 : index
      %80 = vector.load %arg8[%c1_45, %c0_46, %c0_47] : memref<2x16x1xf32, #tpu.memory_space<vmem>>, vector<1x16x1xf32>
      %81 = vector.shape_cast %80 : vector<1x16x1xf32> to vector<16x1xf32>
      %82 = vector.shape_cast %65 : vector<16x1xf32> to vector<1x16x1xf32>
      tpu.vector_store %arg8[%c1_45, %c0_46, %c0_47], %82 {strides = array<i32>} : memref<2x16x1xf32, #tpu.memory_space<vmem>>, vector<1x16x1xf32>,
      %83 = vector.extract_strided_slice %14 {offsets = [0, 64], sizes = [16, 64], strides = [1, 1]} : vector<16x128xf32> to vector<16x64xf32>
      %cst_48 = arith.constant dense<0.000000e+00> : vector<16x64xf32>
      %84 = tpu.matmul %70, %83, %cst_48 {dimension_numbers = #tpu.dot_dimension_numbers<[1], [0], [0], [1], [0, 0, 1, 1], [], []>} : vector<16x16xf32>, vector<16x64xf32>, vector<16x64xf32> -> vector<16x64xf32>
      %c0_49 = arith.constant 0 : index
      %c64 = arith.constant 64 : index
      %85 = vector.load %arg10[%c0_49, %c64] : memref<16x128xf32, #tpu.memory_space<vmem>>, vector<16x64xf32>
      %86 = vector.broadcast %67 : vector<16x1xf32> to vector<16x64xf32>
      %87 = arith.mulf %86, %85 : vector<16x64xf32>
      %88 = arith.addf %87, %84 : vector<16x64xf32>
      %c0_50 = arith.constant 0 : index
      %c64_51 = arith.constant 64 : index
      %89 = vector.load %arg10[%c0_50, %c64_51] : memref<16x128xf32, #tpu.memory_space<vmem>>, vector<16x64xf32>
      tpu.vector_store %arg10[%c0_50, %c64_51], %88 {strides = array<i32>} : memref<16x128xf32, #tpu.memory_space<vmem>>, vector<16x64xf32>,
      %c0_52 = arith.constant 0 : index
      %c0_53 = arith.constant 0 : index
      %c0_54 = arith.constant 0 : index
      %90 = vector.load %arg9[%c0_52, %c0_53, %c0_54] : memref<2x16x1xf32, #tpu.memory_space<vmem>>, vector<1x16x1xf32>
      %91 = vector.shape_cast %90 : vector<1x16x1xf32> to vector<16x1xf32>
      %92 = tpu.reciprocal %91 : vector<16x1xf32> -> vector<16x1xf32>
      %c0_55 = arith.constant 0 : index
      %c0_56 = arith.constant 0 : index
      %93 = vector.load %arg10[%c0_55, %c0_56] : memref<16x128xf32, #tpu.memory_space<vmem>>, vector<16x64xf32>
      %94 = vector.broadcast %92 : vector<16x1xf32> to vector<16x64xf32>
      %95 = arith.mulf %93, %94 : vector<16x64xf32>
      %c0_57 = arith.constant 0 : index
      %c0_58 = arith.constant 0 : index
      %c0_59 = arith.constant 0 : index
      %96 = vector.load %arg7[%c0_57, %c0_58, %c0_59] : memref<1x16x128xf32, #tpu.memory_space<vmem>>, vector<1x16x64xf32>
      %97 = vector.shape_cast %96 : vector<1x16x64xf32> to vector<16x64xf32>
      %98 = vector.shape_cast %95 : vector<16x64xf32> to vector<1x16x64xf32>
      tpu.vector_store %arg7[%c0_57, %c0_58, %c0_59], %98 {strides = array<i32>} : memref<1x16x128xf32, #tpu.memory_space<vmem>>, vector<1x16x64xf32>,
      %c1_60 = arith.constant 1 : index
      %c0_61 = arith.constant 0 : index
      %c0_62 = arith.constant 0 : index
      %99 = vector.load %arg9[%c1_60, %c0_61, %c0_62] : memref<2x16x1xf32, #tpu.memory_space<vmem>>, vector<1x16x1xf32>
      %100 = vector.shape_cast %99 : vector<1x16x1xf32> to vector<16x1xf32>
      %101 = tpu.reciprocal %100 : vector<16x1xf32> -> vector<16x1xf32>
      %c0_63 = arith.constant 0 : index
      %c64_64 = arith.constant 64 : index
      %102 = vector.load %arg10[%c0_63, %c64_64] : memref<16x128xf32, #tpu.memory_space<vmem>>, vector<16x64xf32>
      %103 = vector.broadcast %101 : vector<16x1xf32> to vector<16x64xf32>
      %104 = arith.mulf %102, %103 : vector<16x64xf32>
      %c0_65 = arith.constant 0 : index
      %c0_66 = arith.constant 0 : index
      %c64_67 = arith.constant 64 : index
      %105 = vector.load %arg7[%c0_65, %c0_66, %c64_67] : memref<1x16x128xf32, #tpu.memory_space<vmem>>, vector<1x16x64xf32>
      %106 = vector.shape_cast %105 : vector<1x16x64xf32> to vector<16x64xf32>
      %107 = vector.shape_cast %104 : vector<16x64xf32> to vector<1x16x64xf32>
      tpu.vector_store %arg7[%c0_65, %c0_66, %c64_67], %107 {strides = array<i32>} : memref<1x16x128xf32, #tpu.memory_space<vmem>>, vector<1x16x64xf32>,
    } else {
    }
    return
  }
  func.func @transform_0(%arg0: i32, %arg1: i32, %arg2: i32, %arg3: i32) -> (i32, i32, i32) {
    %c0_i32 = arith.constant 0 : i32
    %0 = arith.addi %c0_i32, %arg1 : i32
    %c0_i32_0 = arith.constant 0 : i32
    return %arg0, %arg2, %0 : i32, i32, i32
  }
  func.func @transform_1(%arg0: i32, %arg1: i32, %arg2: i32, %arg3: i32) -> (i32, i32, i32) {
    %0 = arith.minsi %arg3, %arg2 : i32
    %c1_i32 = arith.constant 1 : i32
    %1 = arith.addi %c1_i32, %arg1 : i32
    %c0_i32 = arith.constant 0 : i32
    return %arg0, %0, %1 : i32, i32, i32
  }
  func.func @transform_2(%arg0: i32, %arg1: i32, %arg2: i32, %arg3: i32) -> (i32, i32, i32) {
    %0 = arith.minsi %arg3, %arg2 : i32
    %c2_i32 = arith.constant 2 : i32
    %1 = arith.addi %c2_i32, %arg1 : i32
    %c0_i32 = arith.constant 0 : i32
    return %arg0, %0, %1 : i32, i32, i32
  }
  func.func @transform_3(%arg0: i32, %arg1: i32, %arg2: i32, %arg3: i32) -> (i32, i32, i32) {
    %c0_i32 = arith.constant 0 : i32
    return %arg0, %arg2, %arg1 : i32, i32, i32
  }
}

</mosaic_0001>

<llo_original>
// kernel: causal_self_attention.5
$region0: #{causal_self_attention.5}
  #allocation0 [shape = 'u32[]', space=smem, size = 0x4, offset = 0x4, fixed_abs, tag = 'smem constant byte address 0x4 - core index']
  #allocation1 [shape = 'u32[144,128]{1,0:T(1,128)}', space=vmem, size = 0x12000, scoped, tag = 'internal scratch']
  #allocation2 [shape = 'f32[32,128]{1,0:T(8,128)}', space=vmem, size = 0x4000, scoped, tag = 'scratch operand']
  %s0 = inlined_call_operand.vmem [shape: f32[32,128], index: 0, kind: input, shape index: {}]
  %s1 = inlined_call_operand.vmem [shape: f32[128,128], index: 1, kind: input, shape index: {}]
  %s2 = inlined_call_operand.vmem [shape: f32[1,128], index: 2, kind: input, shape index: {}]
  %s3 = inlined_call_operand.hbm [shape: f32[32,128], index: 3, kind: output, shape index: {}]
  %s4 = sld [smem:[#allocation0]]
  $region30: #{causal_self_attention.5} parent=0
    _
  %s6 = ssub.s32 1, %s4
  %s7 = scalar_select 0, %s6, %s4
  $region1: #{causal_self_attention.5} parent=0
    #allocation3 [shape = 'u8[16384]{0}', space=vmem, size = 0x4000, scoped, tag = 'output window, operand 0, single buffered']
    #allocation4 [shape = 's32[1]{0}', space=sflag, size = 0x4, scoped, tag = 'scoped memory for causal_self_attention.5']
    %8 = vsyncpa [#allocation4], 0
    // Predicated region
    $region2: #{causal_self_attention.5} parent=1 // pred_check
      _
    $region3: #{causal_self_attention.5} parent=1 // pred_check_branch
      %10 = sbr.rel (0) target = $region5
    $region4: #{causal_self_attention.5} parent=1 // pred_region
      _
    $region5: #{causal_self_attention.5} parent=1 // pred_fallthru
      _
    // Predicated region
    $region6: #{causal_self_attention.5} parent=1 // pred_check
      _
    $region7: #{causal_self_attention.5} parent=1 // pred_check_branch
      %12 = sbr.rel (0) target = $region9
    $region8: #{causal_self_attention.5} parent=1 // pred_region
      _
    $region9: #{causal_self_attention.5} parent=1 // pred_fallthru
      _
    // Predicated region
    $region10: #{causal_self_attention.5} parent=1 // pred_check
      _
    $region11: #{causal_self_attention.5} parent=1 // pred_check_branch
      %14 = sbr.rel (0) target = $region13
    $region12: #{causal_self_attention.5} parent=1 // pred_region
      _
    $region13: #{causal_self_attention.5} parent=1 // pred_fallthru
      _
    %p15 = scmp.eq.s32.totalorder 0, 0
    // Predicated region
    $region14: #{causal_self_attention.5} parent=1 // pred_check
      %p16 = pneg %p15
    $region15: #{causal_self_attention.5} parent=1 // pred_check_branch
      %18 = sbr.rel (%p16) target = $region17
    $region16: #{causal_self_attention.5} parent=1 // pred_region
      %19 = vst [vmem:[#allocation2] sm:$0xff] 0.0
      %20 = vst [vmem:[#allocation2 + $0x8] sm:$0xff] 0.0
      %21 = vst [vmem:[#allocation2 + $0x10] sm:$0xff] 0.0
      %22 = vst [vmem:[#allocation2 + $0x18] sm:$0xff] 0.0
    $region17: #{causal_self_attention.5} parent=1 // pred_fallthru
      _
    %v23 = vld [vmem:[#allocation2] sm:$0xff]
    %v24 = vld [vmem:[#allocation2 + $0x8] sm:$0xff]
    %v25 = vld [vmem:[#allocation2 + $0x10] sm:$0xff]
    %v26 = vld [vmem:[#allocation2 + $0x18] sm:$0xff]
    %v27 = vld [vmem:[%s0] sm:$0xff]
    %v28 = vld [vmem:[%s0 + $0x8] sm:$0xff]
    %v29 = vld [vmem:[%s0 + $0x10] sm:$0xff]
    %v30 = vld [vmem:[%s0 + $0x18] sm:$0xff]
    %v31 = vld [vmem:[%s1] sm:$0xff]
    %v32 = vld [vmem:[%s1 + $0x8] sm:$0xff]
    %v33 = vld [vmem:[%s1 + $0x10] sm:$0xff]
    %v34 = vld [vmem:[%s1 + $0x18] sm:$0xff]
    %v35 = vld [vmem:[%s1 + $0x20] sm:$0xff]
    %v36 = vld [vmem:[%s1 + $0x28] sm:$0xff]
    %v37 = vld [vmem:[%s1 + $0x30] sm:$0xff]
    %v38 = vld [vmem:[%s1 + $0x38] sm:$0xff]
    %v39 = vld [vmem:[%s1 + $0x40] sm:$0xff]
    %v40 = vld [vmem:[%s1 + $0x48] sm:$0xff]
    %v41 = vld [vmem:[%s1 + $0x50] sm:$0xff]
    %v42 = vld [vmem:[%s1 + $0x58] sm:$0xff]
    %v43 = vld [vmem:[%s1 + $0x60] sm:$0xff]
    %v44 = vld [vmem:[%s1 + $0x68] sm:$0xff]
    %v45 = vld [vmem:[%s1 + $0x70] sm:$0xff]
    %v46 = vld [vmem:[%s1 + $0x78] sm:$0xff]
    %47 = vmatprep.subr.mxu0 0.0
    %48 = vmatpush1.msra.mxu0 %v31
    %49 = vmatprep.subr.mxu0 0.0
    %50 = vmatpush1.msra.mxu0 %v32
    %51 = vmatprep.subr.mxu0 0.0
    %52 = vmatpush1.msra.mxu0 %v33
    %53 = vmatprep.subr.mxu0 0.0
    %54 = vmatpush1.msra.mxu0 %v34
    %55 = vmatprep.subr.mxu0 0.0
    %56 = vmatpush1.msra.mxu0 %v35
    %57 = vmatprep.subr.mxu0 0.0
    %58 = vmatpush1.msra.mxu0 %v36
    %59 = vmatprep.subr.mxu0 0.0
    %60 = vmatpush1.msra.mxu0 %v37
    %61 = vmatprep.subr.mxu0 0.0
    %62 = vmatpush1.msra.mxu0 %v38
    %63 = vmatprep.subr.mxu0 0.0
    %64 = vmatpush1.msra.mxu0 %v39
    %65 = vmatprep.subr.mxu0 0.0
    %66 = vmatpush1.msra.mxu0 %v40
    %67 = vmatprep.subr.mxu0 0.0
    %68 = vmatpush1.msra.mxu0 %v41
    %69 = vmatprep.subr.mxu0 0.0
    %70 = vmatpush1.msra.mxu0 %v42
    %71 = vmatprep.subr.mxu0 0.0
    %72 = vmatpush1.msra.mxu0 %v43
    %73 = vmatprep.subr.mxu0 0.0
    %74 = vmatpush1.msra.mxu0 %v44
    %75 = vmatprep.subr.mxu0 0.0
    %76 = vmatpush1.msra.mxu0 %v45
    %77 = vmatprep.subr.mxu0 0.0
    %78 = vmatpush1.msra.mxu0 %v46
    %79 = vmatprep.subr.mxu0 0.0
    %80 = vmatpush1.msra.mxu0 0.0
    %81 = vmatprep.subr.mxu0 0.0
    %82 = vmatpush1.msra.mxu0 0.0
    %83 = vmatprep.subr.mxu0 0.0
    %84 = vmatpush1.msra.mxu0 0.0
    %85 = vmatprep.subr.mxu0 0.0
    %86 = vmatpush1.msra.mxu0 0.0
    %87 = vmatprep.subr.mxu0 0.0
    %88 = vmatpush1.msra.mxu0 0.0
    %89 = vmatprep.subr.mxu0 0.0
    %90 = vmatpush1.msra.mxu0 0.0
    %91 = vmatprep.subr.mxu0 0.0
    %92 = vmatpush1.msra.mxu0 0.0
    %93 = vmatprep.subr.mxu0 0.0
    %94 = vmatpush1.msra.mxu0 0.0
    %95 = vmatprep.subr.mxu0 0.0
    %96 = vmatpush1.msra.mxu0 0.0
    %97 = vmatprep.subr.mxu0 0.0
    %98 = vmatpush1.msra.mxu0 0.0
    %99 = vmatprep.subr.mxu0 0.0
    %100 = vmatpush1.msra.mxu0 0.0
    %101 = vmatprep.subr.mxu0 0.0
    %102 = vmatpush1.msra.mxu0 0.0
    %103 = vmatprep.subr.mxu0 0.0
    %104 = vmatpush1.msra.mxu0 0.0
    %105 = vmatprep.subr.mxu0 0.0
    %106 = vmatpush1.msra.mxu0 0.0
    %107 = vmatprep.subr.mxu0 0.0
    %108 = vmatpush1.msra.mxu0 0.0
    %109 = vmatprep.subr.mxu0 0.0
    %110 = vmatpush1.msra.mxu0 0.0
    %111 = vmatprep.mubr.f32.mxu0 0.0
    %112 = vmatmul.mubr.f32.gmra.mrb[0].mxu0 %v27
    %v113 = vpop.f32.mrb[0].mxu0
    %v114 = vadd.f32 0.0, %v113
    %v115 = vpop.f32.mrb[0].mxu0
    %116 = vmatprep.mubr.f32.mxu0 0.0
    %117 = vmatmul.mubr.f32.gmra.mrb[0].mxu0 %v28
    %v118 = vpop.f32.mrb[0].mxu0
    %v119 = vadd.f32 0.0, %v118
    %v120 = vpop.f32.mrb[0].mxu0
    %121 = vmatprep.mubr.f32.mxu0 0.0
    %122 = vmatmul.mubr.f32.gmra.mrb[0].mxu0 %v29
    %v123 = vpop.f32.mrb[0].mxu0
    %v124 = vadd.f32 0.0, %v123
    %v125 = vpop.f32.mrb[0].mxu0
    %126 = vmatprep.mubr.f32.mxu0 0.0
    %127 = vmatmul.mubr.f32.gmra.mrb[0].mxu0 %v30
    %v128 = vpop.f32.mrb[0].mxu0
    %v129 = vadd.f32 0.0, %v128
    %v130 = vpop.f32.mrb[0].mxu0
    %131 = vdwg.mxu0
    %v132 = vadd.f32 %v23, %v114
    %v133 = vadd.f32 %v24, %v119
    %v134 = vadd.f32 %v25, %v124
    %v135 = vadd.f32 %v26, %v129
    %136 = vst [vmem:[#allocation2] sm:$0xff] %v132
    %137 = vst [vmem:[#allocation2 + $0x8] sm:$0xff] %v133
    %138 = vst [vmem:[#allocation2 + $0x10] sm:$0xff] %v134
    %139 = vst [vmem:[#allocation2 + $0x18] sm:$0xff] %v135
    // Predicated region
    $region18: #{causal_self_attention.5} parent=1 // pred_check
      %p140 = pneg %p15
    $region19: #{causal_self_attention.5} parent=1 // pred_check_branch
      %142 = sbr.rel (%p140) target = $region21
    $region20: #{causal_self_attention.5} parent=1 // pred_region
      %v143 = vld [vmem:[#allocation2] sm:$0xff]
      %v144 = vld [vmem:[#allocation2 + $0x8] sm:$0xff]
      %v145 = vld [vmem:[#allocation2 + $0x10] sm:$0xff]
      %v146 = vld [vmem:[#allocation2 + $0x18] sm:$0xff]
      %v147 = vld [vmem:[%s2] sm:$0x1]
      %v149 = vlaneseq
      %v150 = vshrl.u32 %v149, 7
      %v151 = vsub.s32 0, %v150
      %v152 = vrot.slane %v147, %v151
      %v154 = vadd.f32 %v143, %v152
      %v155 = vadd.f32 %v144, %v152
      %v156 = vadd.f32 %v145, %v152
      %v157 = vadd.f32 %v146, %v152
      %158 = vst [vmem:[#allocation3] sm:$0xff] %v154
      %159 = vst [vmem:[#allocation3 + $0x8] sm:$0xff] %v155
      %160 = vst [vmem:[#allocation3 + $0x10] sm:$0xff] %v156
      %161 = vst [vmem:[#allocation3 + $0x18] sm:$0xff] %v157
    $region21: #{causal_self_attention.5} parent=1 // pred_fallthru
      _
    // Predicated region
    $region22: #{causal_self_attention.5} parent=1 // pred_check
      _
    $region23: #{causal_self_attention.5} parent=1 // pred_check_branch
      %163 = sbr.rel (0) target = $region25
    $region24: #{causal_self_attention.5} parent=1 // pred_region
      %s165 = ssub.s32 512, 512
      %166 = vsyncadd [#allocation4], %s165
      %s167 = sshll.u32 [#allocation3], 4
      %s168 = int_to_ptr.vmem [resolvable:$true] %s167
      %173 = dma.vmem_to_hbm [thread:$0]  %s168, 512, %s3, [#allocation4], 128, 128, 8
    $region25: #{causal_self_attention.5} parent=1 // pred_fallthru
      _
    // Predicated region
    $region26: #{causal_self_attention.5} parent=1 // pred_check
      _
    $region27: #{causal_self_attention.5} parent=1 // pred_check_branch
      %175 = sbr.rel (0) target = $region29
    $region28: #{causal_self_attention.5} parent=1 // pred_region
      %176 = dma.done [#allocation4], 512
    $region29: #{causal_self_attention.5} parent=1 // pred_fallthru
      _
    %177 = vsyncpa [#allocation4], 1

// kernel: causal_self_attention.3
$region0: #{causal_self_attention.3}
  #allocation0 [shape = 'u32[]', space=smem, size = 0x4, offset = 0x4, fixed_abs, tag = 'smem constant byte address 0x4 - core index']
  #allocation1 [shape = 'u32[144,128]{1,0:T(1,128)}', space=vmem, size = 0x12000, scoped, tag = 'internal scratch']
  #allocation2 [shape = 'f32[32,128]{1,0:T(8,128)}', space=vmem, size = 0x4000, scoped, tag = 'scratch operand']
  %s0 = inlined_call_operand.hbm [shape: f32[32,128], index: 0, kind: input, shape index: {}]
  %s1 = inlined_call_operand.hbm [shape: f32[128,384], index: 1, kind: input, shape index: {}]
  %s2 = inlined_call_operand.vmem [shape: f32[1,384], index: 2, kind: input, shape index: {}]
  %s3 = inlined_call_operand.vmem [shape: f32[32,384], index: 3, kind: output, shape index: {}]
  %s4 = sld [smem:[#allocation0]]
  $region95: #{causal_self_attention.3} parent=0
    _
  %s6 = ssub.s32 1, %s4
  %s7 = scalar_select 0, %s6, %s4
  $region1: #{causal_self_attention.3} parent=0
    #allocation3 [shape = 'u8[16384]{0}', space=vmem, size = 0x4000, scoped, tag = 'input window, operand 0, single buffered']
    #allocation4 [shape = 's32[2]{0}', space=sflag, size = 0x8, scoped, tag = 'scoped memory for causal_self_attention.3']
    #allocation5 [shape = 'u8[131072]{0}', space=vmem, size = 0x20000, scoped, tag = 'input window, operand 1']
    #allocation6 [shape = 's32[2]{0}', space=sflag, size = 0x8, scoped, tag = 'scoped memory for causal_self_attention.3']
    #allocation7 [shape = 'u8[32768]{0}', space=vmem, size = 0x8000, scoped, tag = 'output window, operand 0']
    %8 = vsyncpa [#allocation4], 0
    %9 = vsyncpa [#allocation6], 0
    %s10 = scalar_lea.sflag [#allocation6], 1
    %11 = vsyncpa %s10, 0
    loop: start=0, step=1, limit=5
    $region2: #{causal_self_attention.3} parent=1 // loop_pre_header
      _
    $region3: #{causal_self_attention.3} parent=1 // loop_header
      %s13 = sphi 0, %s17
      %p14 = scmp.ge.s32.totalorder %s13, 5
      %s20 = sphi 0, %s39
      %s21 = sphi 0, %s35
      %s22 = sphi 0, %s31
      %s23 = sphi 0, %s20
      %s24 = sphi 0, %s21
      %s25 = sphi 0, %s22
      %s26 = sphi 0, %s23
      %s27 = sphi 0, %s24
      %s28 = sphi 0, %s25
      %s44 = sphi 0, %s46
      %s47 = sphi 0, %s44
      %s48 = sphi 0, %s47
      %s64 = sphi 0, %s48
      %s72 = sphi 0, %s74
      %s75 = sphi 0, %s72
      %s76 = sphi 0, %s75
      %s92 = sphi 0, %s76
      %s98 = sphi 0, %s100
      %s101 = sphi 0, %s98
      %s102 = sphi 0, %s101
      %s118 = sphi 0, %s102
      %s126 = sphi 0, %s128
      %s129 = sphi 0, %s126
      %s130 = sphi 0, %s129
      %s146 = sphi 0, %s130
    $region4: #{causal_self_attention.3} parent=1 // loop_header_branch
      %16 = sbr.rel (%p14) target = $region8
    $region5: #{causal_self_attention.3} parent=1 // loop_body
      %s18 = ssub.s32 %s13, 1
      %s19 = ssub.s32 %s13, 2
      %s29 = sadd.s32 1, %s22
      %p30 = scmp.ge.s32.totalorder %s29, 1
      %s31 = scalar_select %p30, 0, %s29
      %s32 = sadd.s32 1, %s21
      %s33 = scalar_select %p30, %s32, %s21
      %p34 = scmp.ge.s32.totalorder %s33, 3
      %s35 = scalar_select %p34, 0, %s33
      %s36 = sadd.s32 1, %s20
      %s37 = scalar_select %p34, %s36, %s20
      %p38 = scmp.ge.s32.totalorder %s37, 1
      %s39 = scalar_select %p38, 0, %s37
      %s40 = ssub.s32 %s20, %s39
      %s41 = ssub.s32 %s22, %s31
      %s42 = sor.u32 %s40, %s41
      %p43 = scmp.eq.s32.totalorder %s42, 0
      %s45 = sadd.s32 %s44, 1
      %s46 = scalar_select %p43, %s44, %s45
      %p49 = pneg %p43
      %p50 = scmp.eq.s32.totalorder %s13, 2
      %p51 = por %p49, %p50
      %p52 = scmp.ne.s32.totalorder %s44, %s47
      %p53 = scmp.eq.s32.totalorder %s13, 0
      %p54 = por %p52, %p53
      %p55 = scmp.ne.s32.totalorder %s44, %s47
      %p56 = scmp.eq.s32.totalorder %s18, 2
      %p57 = por %p55, %p56
      %p58 = scmp.ne.s32.totalorder %s47, %s48
      %p59 = scmp.eq.s32.totalorder %s18, 0
      %p60 = por %p58, %p59
      %p61 = scmp.ne.s32.totalorder %s47, %s48
      %p62 = scmp.eq.s32.totalorder %s19, 2
      %p63 = por %p61, %p62
      %p65 = scmp.ne.s32.totalorder %s48, %s64
      %p66 = scmp.eq.s32.totalorder %s19, 0
      %p67 = por %p65, %p66
      %s68 = ssub.s32 %s22, %s31
      %s69 = ssub.s32 %s21, %s35
      %s70 = sor.u32 %s68, %s69
      %p71 = scmp.eq.s32.totalorder %s70, 0
      %s73 = sadd.s32 %s72, 1
      %s74 = scalar_select %p71, %s72, %s73
      %p77 = pneg %p71
      %p78 = scmp.eq.s32.totalorder %s13, 2
      %p79 = por %p77, %p78
      %p80 = scmp.ne.s32.totalorder %s72, %s75
      %p81 = scmp.eq.s32.totalorder %s13, 0
      %p82 = por %p80, %p81
      %p83 = scmp.ne.s32.totalorder %s72, %s75
      %p84 = scmp.eq.s32.totalorder %s18, 2
      %p85 = por %p83, %p84
      %p86 = scmp.ne.s32.totalorder %s75, %s76
      %p87 = scmp.eq.s32.totalorder %s18, 0
      %p88 = por %p86, %p87
      %p89 = scmp.ne.s32.totalorder %s75, %s76
      %p90 = scmp.eq.s32.totalorder %s19, 2
      %p91 = por %p89, %p90
      %p93 = scmp.ne.s32.totalorder %s76, %s92
      %p94 = scmp.eq.s32.totalorder %s19, 0
      %p95 = por %p93, %p94
      %s96 = ssub.s32 %s21, %s35
      %p97 = scmp.eq.s32.totalorder %s96, 0
      %s99 = sadd.s32 %s98, 1
      %s100 = scalar_select %p97, %s98, %s99
      %p103 = pneg %p97
      %p104 = scmp.eq.s32.totalorder %s13, 2
      %p105 = por %p103, %p104
      %p106 = scmp.ne.s32.totalorder %s98, %s101
      %p107 = scmp.eq.s32.totalorder %s13, 0
      %p108 = por %p106, %p107
      %p109 = scmp.ne.s32.totalorder %s98, %s101
      %p110 = scmp.eq.s32.totalorder %s18, 2
      %p111 = por %p109, %p110
      %p112 = scmp.ne.s32.totalorder %s101, %s102
      %p113 = scmp.eq.s32.totalorder %s18, 0
      %p114 = por %p112, %p113
      %p115 = scmp.ne.s32.totalorder %s101, %s102
      %p116 = scmp.eq.s32.totalorder %s19, 2
      %p117 = por %p115, %p116
      %p119 = scmp.ne.s32.totalorder %s102, %s118
      %p120 = scmp.eq.s32.totalorder %s19, 0
      %p121 = por %p119, %p120
      %s122 = ssub.s32 %s20, %s39
      %s123 = ssub.s32 %s21, %s35
      %s124 = sor.u32 %s122, %s123
      %p125 = scmp.eq.s32.totalorder %s124, 0
      %s127 = sadd.s32 %s126, 1
      %s128 = scalar_select %p125, %s126, %s127
      %p131 = pneg %p125
      %p132 = scmp.eq.s32.totalorder %s13, 2
      %p133 = por %p131, %p132
      %p134 = scmp.ne.s32.totalorder %s126, %s129
      %p135 = scmp.eq.s32.totalorder %s13, 0
      %p136 = por %p134, %p135
      %p137 = scmp.ne.s32.totalorder %s126, %s129
      %p138 = scmp.eq.s32.totalorder %s18, 2
      %p139 = por %p137, %p138
      %p140 = scmp.ne.s32.totalorder %s129, %s130
      %p141 = scmp.eq.s32.totalorder %s18, 0
      %p142 = por %p140, %p141
      %p143 = scmp.ne.s32.totalorder %s129, %s130
      %p144 = scmp.eq.s32.totalorder %s19, 2
      %p145 = por %p143, %p144
      %p147 = scmp.ne.s32.totalorder %s130, %s146
      %p148 = scmp.eq.s32.totalorder %s19, 0
      %p149 = por %p147, %p148
      %p150 = scmp.le.s32.totalorder 1, %s13
      %p151 = scmp.lt.s32.totalorder %s13, 4
      %p152 = pnand %p150, %p151
      %p153 = pneg %p152
      // Predicated region
      $region9: #{causal_self_attention.3} parent=5 // pred_check
        _
      $region10: #{causal_self_attention.3} parent=5 // pred_check_branch
        %155 = sbr.rel (%p152) target = $region12
      $region11: #{causal_self_attention.3} parent=5 // pred_region
        %s156 = ssub.s32 %s13, 1
        // Predicated region
        $region13: #{causal_self_attention.3} parent=11 // pred_check
          %p157 = pneg %p60
        $region14: #{causal_self_attention.3} parent=11 // pred_check_branch
          %159 = sbr.rel (%p157) target = $region16
        $region15: #{causal_self_attention.3} parent=11 // pred_region
          %s160 = smul.u32 4, %s23
          %s162 = ssub.s32 512, 512
          %163 = vsyncadd [#allocation4], %s162
          %s164 = sadd.s32 %s25, %s160
          %s165 = smul.addr %s164, 128
          %s166 = scalar_lea.hbm %s0, %s165
          %s167 = sshll.u32 [#allocation3], 4
          %s168 = int_to_ptr.vmem [resolvable:$true] %s167
          %173 = dma.hbm_to_vmem [thread:$0]  %s166, 512, %s168, [#allocation4], 128, 128, 8
        $region16: #{causal_self_attention.3} parent=11 // pred_fallthru
          _
      $region12: #{causal_self_attention.3} parent=5 // pred_fallthru
        _
      %p174 = scmp.lt.s32.totalorder %s13, 3
      // Predicated region
      $region17: #{causal_self_attention.3} parent=5 // pred_check
        %p175 = pneg %p174
      $region18: #{causal_self_attention.3} parent=5 // pred_check_branch
        %177 = sbr.rel (%p175) target = $region20
      $region19: #{causal_self_attention.3} parent=5 // pred_region
        // Predicated region
        $region21: #{causal_self_attention.3} parent=19 // pred_check
          %p178 = pneg %p82
        $region22: #{causal_self_attention.3} parent=19 // pred_check_branch
          %180 = sbr.rel (%p178) target = $region24
        $region23: #{causal_self_attention.3} parent=19 // pred_region
          %s181 = sand.u32 %s72, 1
          %s182 = scalar_lea.sflag [#allocation6], %s181
          %s183 = sand.u32 %s72, 1
          %s184 = smul.addr %s183, 128
          %s185 = scalar_lea.vmem [#allocation5], %s184
          %s186 = smul.u32 16, %s22
          %s188 = ssub.s32 2048, 2048
          %189 = vsyncadd %s182, %s188
          %s190 = smul.addr %s186, 3
          %s191 = sadd.s32 %s21, %s190
          %s192 = smul.addr %s191, 128
          %s193 = scalar_lea.hbm %s1, %s192
          %s194 = sshll.u32 %s185, 4
          %s195 = int_to_ptr.vmem [resolvable:$true] %s194
          %200 = dma.hbm_to_vmem [thread:$0]  %s193, 2048, %s195, %s182, 384, 128, 8
        $region24: #{causal_self_attention.3} parent=19 // pred_fallthru
          _
        // Predicated region
        $region25: #{causal_self_attention.3} parent=19 // pred_check
          %p201 = pneg %p108
        $region26: #{causal_self_attention.3} parent=19 // pred_check_branch
          %203 = sbr.rel (%p201) target = $region28
        $region27: #{causal_self_attention.3} parent=19 // pred_region
          %p204 = scmp.lt.s32.totalorder %s21, 2
          %s205 = scalar_select %p204, %s21, 2
          %s206 = scalar_lea.vmem %s2, %s205
        $region28: #{causal_self_attention.3} parent=19 // pred_fallthru
          _
      $region20: #{causal_self_attention.3} parent=5 // pred_fallthru
        _
      %p207 = scmp.le.s32.totalorder 1, %s13
      %p208 = scmp.lt.s32.totalorder %s13, 4
      %p209 = pnand %p207, %p208
      %p210 = pneg %p209
      // Predicated region
      $region29: #{causal_self_attention.3} parent=5 // pred_check
        _
      $region30: #{causal_self_attention.3} parent=5 // pred_check_branch
        %212 = sbr.rel (%p209) target = $region32
      $region31: #{causal_self_attention.3} parent=5 // pred_region
        %s213 = ssub.s32 %s13, 1
        // Predicated region
        $region33: #{causal_self_attention.3} parent=31 // pred_check
          %p214 = pneg %p60
        $region34: #{causal_self_attention.3} parent=31 // pred_check_branch
          %216 = sbr.rel (%p214) target = $region36
        $region35: #{causal_self_attention.3} parent=31 // pred_region
          %217 = dma.done [#allocation4], 512
        $region36: #{causal_self_attention.3} parent=31 // pred_fallthru
          _
        %s218 = sand.u32 %s75, 1
        %s219 = scalar_lea.sflag [#allocation6], %s218
        %s220 = sand.u32 %s75, 1
        %s221 = smul.addr %s220, 128
        %s222 = scalar_lea.vmem [#allocation5], %s221
        // Predicated region
        $region37: #{causal_self_attention.3} parent=31 // pred_check
          %p223 = pneg %p88
        $region38: #{causal_self_attention.3} parent=31 // pred_check_branch
          %225 = sbr.rel (%p223) target = $region40
        $region39: #{causal_self_attention.3} parent=31 // pred_region
          %226 = dma.done %s219, 2048
        $region40: #{causal_self_attention.3} parent=31 // pred_fallthru
          _
        %p227 = pneg %p60
        %p228 = pneg %p57
        %s229 = sand.u32 %s75, 1
        %s230 = scalar_lea.sflag [#allocation6], %s229
        %s231 = sand.u32 %s75, 1
        %s232 = smul.addr %s231, 128
        %s233 = scalar_lea.vmem [#allocation5], %s232
        %p234 = pneg %p88
        %p235 = pneg %p85
        %p236 = scmp.lt.s32.totalorder %s24, 2
        %s237 = scalar_select %p236, %s24, 2
        %s238 = scalar_lea.vmem %s2, %s237
        %p239 = pneg %p114
        %p240 = pneg %p111
        %p241 = pneg %p142
        %p242 = pneg %p139
        %s243 = sand.u32 %s129, 1
        %s244 = sand.u32 %s129, 1
        %s245 = smul.addr %s244, 32
        %s246 = scalar_lea.vmem [#allocation7], %s245
        %s247 = smul.u32 4, %s23
        %s248 = smul.u32 16, %s25
        %p249 = scmp.lt.s32.totalorder %s24, 2
        %s250 = scalar_select %p249, %s24, 2
        %s251 = scalar_lea.vmem %s2, %s250
        %s252 = smul.u32 4, %s23
        %p253 = scmp.eq.s32.totalorder %s25, 0
        // Predicated region
        $region41: #{causal_self_attention.3} parent=31 // pred_check
          %p254 = pneg %p253
        $region42: #{causal_self_attention.3} parent=31 // pred_check_branch
          %256 = sbr.rel (%p254) target = $region44
        $region43: #{causal_self_attention.3} parent=31 // pred_region
          %257 = vst [vmem:[#allocation2] sm:$0xff] 0.0
          %258 = vst [vmem:[#allocation2 + $0x8] sm:$0xff] 0.0
          %259 = vst [vmem:[#allocation2 + $0x10] sm:$0xff] 0.0
          %260 = vst [vmem:[#allocation2 + $0x18] sm:$0xff] 0.0
        $region44: #{causal_self_attention.3} parent=31 // pred_fallthru
          _
        %v261 = vld [vmem:[#allocation2] sm:$0xff]
        %v262 = vld [vmem:[#allocation2 + $0x8] sm:$0xff]
        %v263 = vld [vmem:[#allocation2 + $0x10] sm:$0xff]
        %v264 = vld [vmem:[#allocation2 + $0x18] sm:$0xff]
        %v265 = vld [vmem:[#allocation3] sm:$0xff]
        %v266 = vld [vmem:[#allocation3 + $0x8] sm:$0xff]
        %v267 = vld [vmem:[#allocation3 + $0x10] sm:$0xff]
        %v268 = vld [vmem:[#allocation3 + $0x18] sm:$0xff]
        %v269 = vld [vmem:[%s222] sm:$0xff]
        %v270 = vld [vmem:[%s222 + $0x8] sm:$0xff]
        %v271 = vld [vmem:[%s222 + $0x10] sm:$0xff]
        %v272 = vld [vmem:[%s222 + $0x18] sm:$0xff]
        %v273 = vld [vmem:[%s222 + $0x20] sm:$0xff]
        %v274 = vld [vmem:[%s222 + $0x28] sm:$0xff]
        %v275 = vld [vmem:[%s222 + $0x30] sm:$0xff]
        %v276 = vld [vmem:[%s222 + $0x38] sm:$0xff]
        %v277 = vld [vmem:[%s222 + $0x40] sm:$0xff]
        %v278 = vld [vmem:[%s222 + $0x48] sm:$0xff]
        %v279 = vld [vmem:[%s222 + $0x50] sm:$0xff]
        %v280 = vld [vmem:[%s222 + $0x58] sm:$0xff]
        %v281 = vld [vmem:[%s222 + $0x60] sm:$0xff]
        %v282 = vld [vmem:[%s222 + $0x68] sm:$0xff]
        %v283 = vld [vmem:[%s222 + $0x70] sm:$0xff]
        %v284 = vld [vmem:[%s222 + $0x78] sm:$0xff]
        %285 = vmatprep.subr.mxu0 0.0
        %286 = vmatpush1.msra.mxu0 %v269
        %287 = vmatprep.subr.mxu0 0.0
        %288 = vmatpush1.msra.mxu0 %v270
        %289 = vmatprep.subr.mxu0 0.0
        %290 = vmatpush1.msra.mxu0 %v271
        %291 = vmatprep.subr.mxu0 0.0
        %292 = vmatpush1.msra.mxu0 %v272
        %293 = vmatprep.subr.mxu0 0.0
        %294 = vmatpush1.msra.mxu0 %v273
        %295 = vmatprep.subr.mxu0 0.0
        %296 = vmatpush1.msra.mxu0 %v274
        %297 = vmatprep.subr.mxu0 0.0
        %298 = vmatpush1.msra.mxu0 %v275
        %299 = vmatprep.subr.mxu0 0.0
        %300 = vmatpush1.msra.mxu0 %v276
        %301 = vmatprep.subr.mxu0 0.0
        %302 = vmatpush1.msra.mxu0 %v277
        %303 = vmatprep.subr.mxu0 0.0
        %304 = vmatpush1.msra.mxu0 %v278
        %305 = vmatprep.subr.mxu0 0.0
        %306 = vmatpush1.msra.mxu0 %v279
        %307 = vmatprep.subr.mxu0 0.0
        %308 = vmatpush1.msra.mxu0 %v280
        %309 = vmatprep.subr.mxu0 0.0
        %310 = vmatpush1.msra.mxu0 %v281
        %311 = vmatprep.subr.mxu0 0.0
        %312 = vmatpush1.msra.mxu0 %v282
        %313 = vmatprep.subr.mxu0 0.0
        %314 = vmatpush1.msra.mxu0 %v283
        %315 = vmatprep.subr.mxu0 0.0
        %316 = vmatpush1.msra.mxu0 %v284
        %317 = vmatprep.subr.mxu0 0.0
        %318 = vmatpush1.msra.mxu0 0.0
        %319 = vmatprep.subr.mxu0 0.0
        %320 = vmatpush1.msra.mxu0 0.0
        %321 = vmatprep.subr.mxu0 0.0
        %322 = vmatpush1.msra.mxu0 0.0
        %323 = vmatprep.subr.mxu0 0.0
        %324 = vmatpush1.msra.mxu0 0.0
        %325 = vmatprep.subr.mxu0 0.0
        %326 = vmatpush1.msra.mxu0 0.0
        %327 = vmatprep.subr.mxu0 0.0
        %328 = vmatpush1.msra.mxu0 0.0
        %329 = vmatprep.subr.mxu0 0.0
        %330 = vmatpush1.msra.mxu0 0.0
        %331 = vmatprep.subr.mxu0 0.0
        %332 = vmatpush1.msra.mxu0 0.0
        %333 = vmatprep.subr.mxu0 0.0
        %334 = vmatpush1.msra.mxu0 0.0
        %335 = vmatprep.subr.mxu0 0.0
        %336 = vmatpush1.msra.mxu0 0.0
        %337 = vmatprep.subr.mxu0 0.0
        %338 = vmatpush1.msra.mxu0 0.0
        %339 = vmatprep.subr.mxu0 0.0
        %340 = vmatpush1.msra.mxu0 0.0
        %341 = vmatprep.subr.mxu0 0.0
        %342 = vmatpush1.msra.mxu0 0.0
        %343 = vmatprep.subr.mxu0 0.0
        %344 = vmatpush1.msra.mxu0 0.0
        %345 = vmatprep.subr.mxu0 0.0
        %346 = vmatpush1.msra.mxu0 0.0
        %347 = vmatprep.subr.mxu0 0.0
        %348 = vmatpush1.msra.mxu0 0.0
        %349 = vmatprep.mubr.f32.mxu0 0.0
        %350 = vmatmul.mubr.f32.gmra.mrb[0].mxu0 %v265
        %v351 = vpop.f32.mrb[0].mxu0
        %v352 = vadd.f32 0.0, %v351
        %v353 = vpop.f32.mrb[0].mxu0
        %354 = vmatprep.mubr.f32.mxu0 0.0
        %355 = vmatmul.mubr.f32.gmra.mrb[0].mxu0 %v266
        %v356 = vpop.f32.mrb[0].mxu0
        %v357 = vadd.f32 0.0, %v356
        %v358 = vpop.f32.mrb[0].mxu0
        %359 = vmatprep.mubr.f32.mxu0 0.0
        %360 = vmatmul.mubr.f32.gmra.mrb[0].mxu0 %v267
        %v361 = vpop.f32.mrb[0].mxu0
        %v362 = vadd.f32 0.0, %v361
        %v363 = vpop.f32.mrb[0].mxu0
        %364 = vmatprep.mubr.f32.mxu0 0.0
        %365 = vmatmul.mubr.f32.gmra.mrb[0].mxu0 %v268
        %v366 = vpop.f32.mrb[0].mxu0
        %v367 = vadd.f32 0.0, %v366
        %v368 = vpop.f32.mrb[0].mxu0
        %369 = vdwg.mxu0
        %v370 = vadd.f32 %v261, %v352
        %v371 = vadd.f32 %v262, %v357
        %v372 = vadd.f32 %v263, %v362
        %v373 = vadd.f32 %v264, %v367
        %374 = vst [vmem:[#allocation2] sm:$0xff] %v370
        %375 = vst [vmem:[#allocation2 + $0x8] sm:$0xff] %v371
        %376 = vst [vmem:[#allocation2 + $0x10] sm:$0xff] %v372
        %377 = vst [vmem:[#allocation2 + $0x18] sm:$0xff] %v373
        // Predicated region
        $region45: #{causal_self_attention.3} parent=31 // pred_check
          %p378 = pneg %p253
        $region46: #{causal_self_attention.3} parent=31 // pred_check_branch
          %380 = sbr.rel (%p378) target = $region48
        $region47: #{causal_self_attention.3} parent=31 // pred_region
          %v381 = vld [vmem:[#allocation2] sm:$0xff]
          %v382 = vld [vmem:[#allocation2 + $0x8] sm:$0xff]
          %v383 = vld [vmem:[#allocation2 + $0x10] sm:$0xff]
          %v384 = vld [vmem:[#allocation2 + $0x18] sm:$0xff]
          %v385 = vld [vmem:[%s251] sm:$0x1]
          %v387 = vlaneseq
          %v388 = vshrl.u32 %v387, 7
          %v389 = vsub.s32 0, %v388
          %v390 = vrot.slane %v385, %v389
          %v392 = vadd.f32 %v381, %v390
          %v393 = vadd.f32 %v382, %v390
          %v394 = vadd.f32 %v383, %v390
          %v395 = vadd.f32 %v384, %v390
          %396 = vst [vmem:[%s246] sm:$0xff] %v392
          %397 = vst [vmem:[%s246 + $0x8] sm:$0xff] %v393
          %398 = vst [vmem:[%s246 + $0x10] sm:$0xff] %v394
          %399 = vst [vmem:[%s246 + $0x18] sm:$0xff] %v395
        $region48: #{causal_self_attention.3} parent=31 // pred_fallthru
          _
        %s400 = sand.u32 %s129, 1
        %s401 = sand.u32 %s129, 1
        %s402 = smul.addr %s401, 32
        %s403 = scalar_lea.vmem [#allocation7], %s402
        // Predicated region
        $region49: #{causal_self_attention.3} parent=31 // pred_check
          %p404 = pneg %p139
        $region50: #{causal_self_attention.3} parent=31 // pred_check_branch
          %406 = sbr.rel (%p404) target = $region52
        $region51: #{causal_self_attention.3} parent=31 // pred_region
          %s407 = smul.u32 4, %s23
          %s408 = smul.addr %s407, 3
          %s409 = sadd.s32 %s24, %s408
          %s410 = smul.addr %s409, 8
          %s411 = scalar_lea.vmem %s3, %s410
          // Predicated region
          $region53: #{causal_self_attention.3} parent=51 // pred_check
            _
          $region54: #{causal_self_attention.3} parent=51 // pred_check_branch
            %413 = sbr.rel (0) target = $region56
          $region55: #{causal_self_attention.3} parent=51 // pred_region
            // Predicated region
            $region57: #{causal_self_attention.3} parent=55 // pred_check
              _
            $region58: #{causal_self_attention.3} parent=55 // pred_check_branch
              %415 = sbr.rel (0) target = $region60
            $region59: #{causal_self_attention.3} parent=55 // pred_region
              // Predicated region
              $region72: #{causal_self_attention.3} parent=59 // pred_check
                _
              $region73: #{causal_self_attention.3} parent=59 // pred_check_branch
                %436 = sbr.rel (0) target = $region75
              $region74: #{causal_self_attention.3} parent=59 // pred_region
                loop: start=0, step=1, limit=1
                $region76: #{causal_self_attention.3} parent=74 // loop_pre_header
                  _
                $region77: #{causal_self_attention.3} parent=74 // loop_header
                  %s438 = sphi 0, %s442
                  %p439 = scmp.ge.s32.totalorder %s438, 1
                  %s443 = sphi %s403, %s403
                  %s444 = sphi %s411, %s411
                $region78: #{causal_self_attention.3} parent=74 // loop_header_branch
                  %441 = sbr.rel (%p439) target = $region82
                $region79: #{causal_self_attention.3} parent=74 // loop_body
                  %v445 = vld [vmem:[%s443] sm:$0xff]
                  %446 = vst [vmem:[%s444] sm:$0xff] %v445
                  %v447 = vld [vmem:[%s443 + $0x8] sm:$0xff]
                  %448 = vst [vmem:[%s444 + $0x18] sm:$0xff] %v447
                  %v449 = vld [vmem:[%s443 + $0x10] sm:$0xff]
                  %450 = vst [vmem:[%s444 + $0x30] sm:$0xff] %v449
                  %v451 = vld [vmem:[%s443 + $0x18] sm:$0xff]
                  %452 = vst [vmem:[%s444 + $0x48] sm:$0xff] %v451
                $region80: #{causal_self_attention.3} parent=74 // loop_footer
                  %s442 = sadd.s32 1, %s438
                $region81: #{causal_self_attention.3} parent=74 // loop_footer_branch
                  %437 = sbr.rel target = $region77
                $region82: #{causal_self_attention.3} parent=74 // loop_exit
                  _
              $region75: #{causal_self_attention.3} parent=59 // pred_fallthru
                _
              // Predicated region
              $region83: #{causal_self_attention.3} parent=59 // pred_check
                _
              $region84: #{causal_self_attention.3} parent=59 // pred_check_branch
                %454 = sbr.rel target = $region86
              $region85: #{causal_self_attention.3} parent=59 // pred_region
                _
              $region86: #{causal_self_attention.3} parent=59 // pred_fallthru
                _
            $region60: #{causal_self_attention.3} parent=55 // pred_fallthru
              _
            // Predicated region
            $region61: #{causal_self_attention.3} parent=55 // pred_check
              _
            $region62: #{causal_self_attention.3} parent=55 // pred_check_branch
              %417 = sbr.rel target = $region64
            $region63: #{causal_self_attention.3} parent=55 // pred_region
              loop: start=0, step=1, limit=1
              $region65: #{causal_self_attention.3} parent=63 // loop_pre_header
                _
              $region66: #{causal_self_attention.3} parent=63 // loop_header
                %s420 = sphi 0, %s424
                %p421 = scmp.ge.s32.totalorder %s420, 1
                %s425 = sphi %s403, %s403
                %s426 = sphi %s411, %s411
              $region67: #{causal_self_attention.3} parent=63 // loop_header_branch
                %423 = sbr.rel (%p421) target = $region71
              $region68: #{causal_self_attention.3} parent=63 // loop_body
                %v427 = vld [vmem:[%s425] sm:$0xff]
                %428 = vst [vmem:[%s426] sm:$0xff] %v427
                %v429 = vld [vmem:[%s425 + $0x8] sm:$0xff]
                %430 = vst [vmem:[%s426 + $0x18] sm:$0xff] %v429
                %v431 = vld [vmem:[%s425 + $0x10] sm:$0xff]
                %432 = vst [vmem:[%s426 + $0x30] sm:$0xff] %v431
                %v433 = vld [vmem:[%s425 + $0x18] sm:$0xff]
                %434 = vst [vmem:[%s426 + $0x48] sm:$0xff] %v433
              $region69: #{causal_self_attention.3} parent=63 // loop_footer
                %s424 = sadd.s32 1, %s420
              $region70: #{causal_self_attention.3} parent=63 // loop_footer_branch
                %419 = sbr.rel target = $region66
              $region71: #{causal_self_attention.3} parent=63 // loop_exit
                _
            $region64: #{causal_self_attention.3} parent=55 // pred_fallthru
              _
          $region56: #{causal_self_attention.3} parent=51 // pred_fallthru
            _
          %455 = vnop
        $region52: #{causal_self_attention.3} parent=31 // pred_fallthru
          _
      $region32: #{causal_self_attention.3} parent=5 // pred_fallthru
        _
      %p456 = scmp.le.s32.totalorder 2, %s13
      // Predicated region
      $region87: #{causal_self_attention.3} parent=5 // pred_check
        %p457 = pneg %p456
      $region88: #{causal_self_attention.3} parent=5 // pred_check_branch
        %459 = sbr.rel (%p457) target = $region90
      $region89: #{causal_self_attention.3} parent=5 // pred_region
        %s460 = ssub.s32 %s13, 2
        // Predicated region
        $region91: #{causal_self_attention.3} parent=89 // pred_check
          %p461 = pneg %p145
        $region92: #{causal_self_attention.3} parent=89 // pred_check_branch
          %463 = sbr.rel (%p461) target = $region94
        $region93: #{causal_self_attention.3} parent=89 // pred_region
          %s464 = sand.u32 %s130, 1
          %s465 = sand.u32 %s130, 1
          %s466 = smul.addr %s465, 32
          %s467 = scalar_lea.vmem [#allocation7], %s466
        $region94: #{causal_self_attention.3} parent=89 // pred_fallthru
          _
      $region90: #{causal_self_attention.3} parent=5 // pred_fallthru
        _
    $region6: #{causal_self_attention.3} parent=1 // loop_footer
      %s17 = sadd.s32 1, %s13
    $region7: #{causal_self_attention.3} parent=1 // loop_footer_branch
      %12 = sbr.rel target = $region3
    $region8: #{causal_self_attention.3} parent=1 // loop_exit
      _
    %468 = vsyncpa [#allocation4], 1
    %s469 = scalar_lea.sflag [#allocation4], 1
    %470 = vsyncpa %s469, 1
    %471 = vsyncpa [#allocation6], 1
    %s472 = scalar_lea.sflag [#allocation6], 1
    %473 = vsyncpa %s472, 1

// kernel: causal_self_attention.4
$region0: #{causal_self_attention.4}
  #allocation0 [shape = 'u32[]', space=smem, size = 0x4, offset = 0x4, fixed_abs, tag = 'smem constant byte address 0x4 - core index']
  #allocation1 [shape = 'u32[144,128]{1,0:T(1,128)}', space=vmem, size = 0x12000, scoped, tag = 'internal scratch']
  #allocation2 [shape = 'f32[2,16,1]{2,1,0:T(8,128)}', space=vmem, size = 0x4000, scoped, tag = 'scratch operand']
  #allocation3 [shape = 'f32[2,16,1]{2,1,0:T(8,128)}', space=vmem, size = 0x4000, scoped, tag = 'scratch operand']
  #allocation4 [shape = 'f32[16,128]{1,0:T(8,128)}', space=vmem, size = 0x2000, scoped, tag = 'scratch operand']
  %s0 = inlined_call_operand.vmem [shape: f32[2,16,384], index: 0, kind: input, shape index: {}, may-alias: {0,1,2}]
  %s1 = inlined_call_operand.vmem [shape: f32[2,16,384], index: 1, kind: input, shape index: {}, may-alias: {0,1,2}]
  %s2 = inlined_call_operand.vmem [shape: f32[2,16,384], index: 2, kind: input, shape index: {}, may-alias: {0,1,2}]
  %s3 = inlined_call_operand.vmem [shape: f32[2,16,128], index: 3, kind: output, shape index: {}]
  %s4 = sld [smem:[#allocation0]]
  $region171: #{causal_self_attention.4} parent=0
    _
  %s6 = ssub.s32 1, %s4
  %s7 = scalar_select 0, %s6, %s4
  $region1: #{causal_self_attention.4} parent=0
    #allocation5 [shape = 'u8[16384]{0}', space=vmem, size = 0x4000, scoped, tag = 'input window, operand 0']
    #allocation6 [shape = 'u8[16384]{0}', space=vmem, size = 0x4000, scoped, tag = 'input window, operand 1']
    #allocation7 [shape = 'u8[16384]{0}', space=vmem, size = 0x4000, scoped, tag = 'input window, operand 2']
    loop: start=0, step=1, limit=4
    $region2: #{causal_self_attention.4} parent=1 // loop_pre_header
      _
    $region3: #{causal_self_attention.4} parent=1 // loop_header
      %s9 = sphi 0, %s13
      %p10 = scmp.ge.s32.totalorder %s9, 4
      %s16 = sphi 0, %s42
      %s17 = sphi 0, %s38
      %s18 = sphi 0, %s34
      %s19 = sphi 0, %s30
      %s20 = sphi 0, %s16
      %s21 = sphi 0, %s17
      %s22 = sphi 0, %s18
      %s23 = sphi 0, %s19
      %s24 = sphi 0, %s20
      %s25 = sphi 0, %s21
      %s26 = sphi 0, %s22
      %s27 = sphi 0, %s23
      %s49 = sphi 0, %s51
      %s52 = sphi 0, %s49
      %s53 = sphi 0, %s52
      %s69 = sphi 0, %s53
      %s85 = sphi 0, %s87
      %s88 = sphi 0, %s85
      %s89 = sphi 0, %s88
      %s105 = sphi 0, %s89
      %s121 = sphi 0, %s123
      %s124 = sphi 0, %s121
      %s125 = sphi 0, %s124
      %s141 = sphi 0, %s125
      %s151 = sphi 0, %s153
      %s154 = sphi 0, %s151
      %s155 = sphi 0, %s154
      %s171 = sphi 0, %s155
    $region4: #{causal_self_attention.4} parent=1 // loop_header_branch
      %12 = sbr.rel (%p10) target = $region8
    $region5: #{causal_self_attention.4} parent=1 // loop_body
      %s14 = ssub.s32 %s9, 1
      %s15 = ssub.s32 %s9, 2
      %s28 = sadd.s32 1, %s19
      %p29 = scmp.ge.s32.totalorder %s28, 1
      %s30 = scalar_select %p29, 0, %s28
      %s31 = sadd.s32 1, %s18
      %s32 = scalar_select %p29, %s31, %s18
      %p33 = scmp.ge.s32.totalorder %s32, 1
      %s34 = scalar_select %p33, 0, %s32
      %s35 = sadd.s32 1, %s17
      %s36 = scalar_select %p33, %s35, %s17
      %p37 = scmp.ge.s32.totalorder %s36, 1
      %s38 = scalar_select %p37, 0, %s36
      %s39 = sadd.s32 1, %s16
      %s40 = scalar_select %p37, %s39, %s16
      %p41 = scmp.ge.s32.totalorder %s40, 2
      %s42 = scalar_select %p41, 0, %s40
      %s43 = ssub.s32 %s16, %s42
      %s44 = ssub.s32 %s18, %s34
      %s45 = sor.u32 %s43, %s44
      %s46 = ssub.s32 %s17, %s38
      %s47 = sor.u32 %s45, %s46
      %p48 = scmp.eq.s32.totalorder %s47, 0
      %s50 = sadd.s32 %s49, 1
      %s51 = scalar_select %p48, %s49, %s50
      %p54 = pneg %p48
      %p55 = scmp.eq.s32.totalorder %s9, 1
      %p56 = por %p54, %p55
      %p57 = scmp.ne.s32.totalorder %s49, %s52
      %p58 = scmp.eq.s32.totalorder %s9, 0
      %p59 = por %p57, %p58
      %p60 = scmp.ne.s32.totalorder %s49, %s52
      %p61 = scmp.eq.s32.totalorder %s14, 1
      %p62 = por %p60, %p61
      %p63 = scmp.ne.s32.totalorder %s52, %s53
      %p64 = scmp.eq.s32.totalorder %s14, 0
      %p65 = por %p63, %p64
      %p66 = scmp.ne.s32.totalorder %s52, %s53
      %p67 = scmp.eq.s32.totalorder %s15, 1
      %p68 = por %p66, %p67
      %p70 = scmp.ne.s32.totalorder %s53, %s69
      %p71 = scmp.eq.s32.totalorder %s15, 0
      %p72 = por %p70, %p71
      %p73 = scmp.lt.s32.totalorder %s19, %s18
      %s74 = scalar_select %p73, %s19, %s18
      %s75 = sadd.s32 %s17, 1
      %p76 = scmp.lt.s32.totalorder %s30, %s34
      %s77 = scalar_select %p76, %s30, %s34
      %s78 = sadd.s32 %s38, 1
      %s79 = ssub.s32 %s16, %s42
      %s80 = ssub.s32 %s74, %s77
      %s81 = sor.u32 %s79, %s80
      %s82 = ssub.s32 %s75, %s78
      %s83 = sor.u32 %s81, %s82
      %p84 = scmp.eq.s32.totalorder %s83, 0
      %s86 = sadd.s32 %s85, 1
      %s87 = scalar_select %p84, %s85, %s86
      %p90 = pneg %p84
      %p91 = scmp.eq.s32.totalorder %s9, 1
      %p92 = por %p90, %p91
      %p93 = scmp.ne.s32.totalorder %s85, %s88
      %p94 = scmp.eq.s32.totalorder %s9, 0
      %p95 = por %p93, %p94
      %p96 = scmp.ne.s32.totalorder %s85, %s88
      %p97 = scmp.eq.s32.totalorder %s14, 1
      %p98 = por %p96, %p97
      %p99 = scmp.ne.s32.totalorder %s88, %s89
      %p100 = scmp.eq.s32.totalorder %s14, 0
      %p101 = por %p99, %p100
      %p102 = scmp.ne.s32.totalorder %s88, %s89
      %p103 = scmp.eq.s32.totalorder %s15, 1
      %p104 = por %p102, %p103
      %p106 = scmp.ne.s32.totalorder %s89, %s105
      %p107 = scmp.eq.s32.totalorder %s15, 0
      %p108 = por %p106, %p107
      %p109 = scmp.lt.s32.totalorder %s19, %s18
      %s110 = scalar_select %p109, %s19, %s18
      %s111 = sadd.s32 %s17, 2
      %p112 = scmp.lt.s32.totalorder %s30, %s34
      %s113 = scalar_select %p112, %s30, %s34
      %s114 = sadd.s32 %s38, 2
      %s115 = ssub.s32 %s16, %s42
      %s116 = ssub.s32 %s110, %s113
      %s117 = sor.u32 %s115, %s116
      %s118 = ssub.s32 %s111, %s114
      %s119 = sor.u32 %s117, %s118
      %p120 = scmp.eq.s32.totalorder %s119, 0
      %s122 = sadd.s32 %s121, 1
      %s123 = scalar_select %p120, %s121, %s122
      %p126 = pneg %p120
      %p127 = scmp.eq.s32.totalorder %s9, 1
      %p128 = por %p126, %p127
      %p129 = scmp.ne.s32.totalorder %s121, %s124
      %p130 = scmp.eq.s32.totalorder %s9, 0
      %p131 = por %p129, %p130
      %p132 = scmp.ne.s32.totalorder %s121, %s124
      %p133 = scmp.eq.s32.totalorder %s14, 1
      %p134 = por %p132, %p133
      %p135 = scmp.ne.s32.totalorder %s124, %s125
      %p136 = scmp.eq.s32.totalorder %s14, 0
      %p137 = por %p135, %p136
      %p138 = scmp.ne.s32.totalorder %s124, %s125
      %p139 = scmp.eq.s32.totalorder %s15, 1
      %p140 = por %p138, %p139
      %p142 = scmp.ne.s32.totalorder %s125, %s141
      %p143 = scmp.eq.s32.totalorder %s15, 0
      %p144 = por %p142, %p143
      %s145 = ssub.s32 %s16, %s42
      %s146 = ssub.s32 %s18, %s34
      %s147 = sor.u32 %s145, %s146
      %s148 = ssub.s32 %s17, %s38
      %s149 = sor.u32 %s147, %s148
      %p150 = scmp.eq.s32.totalorder %s149, 0
      %s152 = sadd.s32 %s151, 1
      %s153 = scalar_select %p150, %s151, %s152
      %p156 = pneg %p150
      %p157 = scmp.eq.s32.totalorder %s9, 1
      %p158 = por %p156, %p157
      %p159 = scmp.ne.s32.totalorder %s151, %s154
      %p160 = scmp.eq.s32.totalorder %s9, 0
      %p161 = por %p159, %p160
      %p162 = scmp.ne.s32.totalorder %s151, %s154
      %p163 = scmp.eq.s32.totalorder %s14, 1
      %p164 = por %p162, %p163
      %p165 = scmp.ne.s32.totalorder %s154, %s155
      %p166 = scmp.eq.s32.totalorder %s14, 0
      %p167 = por %p165, %p166
      %p168 = scmp.ne.s32.totalorder %s154, %s155
      %p169 = scmp.eq.s32.totalorder %s15, 1
      %p170 = por %p168, %p169
      %p172 = scmp.ne.s32.totalorder %s155, %s171
      %p173 = scmp.eq.s32.totalorder %s15, 0
      %p174 = por %p172, %p173
      %p175 = scmp.le.s32.totalorder 1, %s9
      %p176 = scmp.lt.s32.totalorder %s9, 3
      %p177 = pnand %p175, %p176
      %p178 = pneg %p177
      // Predicated region
      $region9: #{causal_self_attention.4} parent=5 // pred_check
        _
      $region10: #{causal_self_attention.4} parent=5 // pred_check_branch
        %180 = sbr.rel (%p177) target = $region12
      $region11: #{causal_self_attention.4} parent=5 // pred_region
        %s181 = ssub.s32 %s9, 1
      $region12: #{causal_self_attention.4} parent=5 // pred_fallthru
        _
      %p182 = scmp.lt.s32.totalorder %s9, 2
      // Predicated region
      $region13: #{causal_self_attention.4} parent=5 // pred_check
        %p183 = pneg %p182
      $region14: #{causal_self_attention.4} parent=5 // pred_check_branch
        %185 = sbr.rel (%p183) target = $region16
      $region15: #{causal_self_attention.4} parent=5 // pred_region
        // Predicated region
        $region17: #{causal_self_attention.4} parent=15 // pred_check
          %p186 = pneg %p59
        $region18: #{causal_self_attention.4} parent=15 // pred_check_branch
          %188 = sbr.rel (%p186) target = $region20
        $region19: #{causal_self_attention.4} parent=15 // pred_region
          %s189 = sand.u32 %s49, 1
          %s190 = sand.u32 %s49, 1
          %s191 = smul.addr %s190, 16
          %s192 = scalar_lea.vmem [#allocation5], %s191
          %s193 = smul.u32 2, %s18
          %s194 = smul.addr %s193, 3
          %s195 = sadd.s32 %s17, %s194
          %s196 = smul.addr %s16, 6
          %s197 = sadd.s32 %s195, %s196
          %s198 = smul.addr %s197, 8
          %s199 = scalar_lea.vmem %s0, %s198
          // Predicated region
          $region21: #{causal_self_attention.4} parent=19 // pred_check
            _
          $region22: #{causal_self_attention.4} parent=19 // pred_check_branch
            %201 = sbr.rel (0) target = $region24
          $region23: #{causal_self_attention.4} parent=19 // pred_region
            // Predicated region
            $region25: #{causal_self_attention.4} parent=23 // pred_check
              _
            $region26: #{causal_self_attention.4} parent=23 // pred_check_branch
              %203 = sbr.rel (0) target = $region28
            $region27: #{causal_self_attention.4} parent=23 // pred_region
              // Predicated region
              $region40: #{causal_self_attention.4} parent=27 // pred_check
                _
              $region41: #{causal_self_attention.4} parent=27 // pred_check_branch
                %220 = sbr.rel (0) target = $region43
              $region42: #{causal_self_attention.4} parent=27 // pred_region
                loop: start=0, step=1, limit=1
                $region44: #{causal_self_attention.4} parent=42 // loop_pre_header
                  _
                $region45: #{causal_self_attention.4} parent=42 // loop_header
                  %s222 = sphi 0, %s226
                  %p223 = scmp.ge.s32.totalorder %s222, 1
                  %s227 = sphi %s199, %s199
                  %s228 = sphi %s192, %s192
                $region46: #{causal_self_attention.4} parent=42 // loop_header_branch
                  %225 = sbr.rel (%p223) target = $region50
                $region47: #{causal_self_attention.4} parent=42 // loop_body
                  %v229 = vld [vmem:[%s227] sm:$0xff]
                  %230 = vst [vmem:[%s228] sm:$0xff] %v229
                  %v231 = vld [vmem:[%s227 + $0x18] sm:$0xff]
                  %232 = vst [vmem:[%s228 + $0x8] sm:$0xff] %v231
                $region48: #{causal_self_attention.4} parent=42 // loop_footer
                  %s226 = sadd.s32 1, %s222
                $region49: #{causal_self_attention.4} parent=42 // loop_footer_branch
                  %221 = sbr.rel target = $region45
                $region50: #{causal_self_attention.4} parent=42 // loop_exit
                  _
              $region43: #{causal_self_attention.4} parent=27 // pred_fallthru
                _
              // Predicated region
              $region51: #{causal_self_attention.4} parent=27 // pred_check
                _
              $region52: #{causal_self_attention.4} parent=27 // pred_check_branch
                %234 = sbr.rel target = $region54
              $region53: #{causal_self_attention.4} parent=27 // pred_region
                _
              $region54: #{causal_self_attention.4} parent=27 // pred_fallthru
                _
            $region28: #{causal_self_attention.4} parent=23 // pred_fallthru
              _
            // Predicated region
            $region29: #{causal_self_attention.4} parent=23 // pred_check
              _
            $region30: #{causal_self_attention.4} parent=23 // pred_check_branch
              %205 = sbr.rel target = $region32
            $region31: #{causal_self_attention.4} parent=23 // pred_region
              loop: start=0, step=1, limit=1
              $region33: #{causal_self_attention.4} parent=31 // loop_pre_header
                _
              $region34: #{causal_self_attention.4} parent=31 // loop_header
                %s208 = sphi 0, %s212
                %p209 = scmp.ge.s32.totalorder %s208, 1
                %s213 = sphi %s199, %s199
                %s214 = sphi %s192, %s192
              $region35: #{causal_self_attention.4} parent=31 // loop_header_branch
                %211 = sbr.rel (%p209) target = $region39
              $region36: #{causal_self_attention.4} parent=31 // loop_body
                %v215 = vld [vmem:[%s213] sm:$0xff]
                %216 = vst [vmem:[%s214] sm:$0xff] %v215
                %v217 = vld [vmem:[%s213 + $0x18] sm:$0xff]
                %218 = vst [vmem:[%s214 + $0x8] sm:$0xff] %v217
              $region37: #{causal_self_attention.4} parent=31 // loop_footer
                %s212 = sadd.s32 1, %s208
              $region38: #{causal_self_attention.4} parent=31 // loop_footer_branch
                %207 = sbr.rel target = $region34
              $region39: #{causal_self_attention.4} parent=31 // loop_exit
                _
            $region32: #{causal_self_attention.4} parent=23 // pred_fallthru
              _
          $region24: #{causal_self_attention.4} parent=19 // pred_fallthru
            _
          %235 = vnop
        $region20: #{causal_self_attention.4} parent=15 // pred_fallthru
          _
        // Predicated region
        $region55: #{causal_self_attention.4} parent=15 // pred_check
          %p236 = pneg %p95
        $region56: #{causal_self_attention.4} parent=15 // pred_check_branch
          %238 = sbr.rel (%p236) target = $region58
        $region57: #{causal_self_attention.4} parent=15 // pred_region
          %s239 = sand.u32 %s85, 1
          %s240 = sand.u32 %s85, 1
          %s241 = smul.addr %s240, 16
          %s242 = scalar_lea.vmem [#allocation6], %s241
          %p243 = scmp.lt.s32.totalorder %s19, %s18
          %s244 = scalar_select %p243, %s19, %s18
          %s245 = sadd.s32 %s17, 1
          %s246 = smul.u32 2, %s244
          %s247 = smul.addr %s246, 3
          %s248 = sadd.s32 %s245, %s247
          %s249 = smul.addr %s16, 6
          %s250 = sadd.s32 %s248, %s249
          %s251 = smul.addr %s250, 8
          %s252 = scalar_lea.vmem %s1, %s251
          // Predicated region
          $region59: #{causal_self_attention.4} parent=57 // pred_check
            _
          $region60: #{causal_self_attention.4} parent=57 // pred_check_branch
            %254 = sbr.rel (0) target = $region62
          $region61: #{causal_self_attention.4} parent=57 // pred_region
            // Predicated region
            $region63: #{causal_self_attention.4} parent=61 // pred_check
              _
            $region64: #{causal_self_attention.4} parent=61 // pred_check_branch
              %256 = sbr.rel (0) target = $region66
            $region65: #{causal_self_attention.4} parent=61 // pred_region
              // Predicated region
              $region78: #{causal_self_attention.4} parent=65 // pred_check
                _
              $region79: #{causal_self_attention.4} parent=65 // pred_check_branch
                %273 = sbr.rel (0) target = $region81
              $region80: #{causal_self_attention.4} parent=65 // pred_region
                loop: start=0, step=1, limit=1
                $region82: #{causal_self_attention.4} parent=80 // loop_pre_header
                  _
                $region83: #{causal_self_attention.4} parent=80 // loop_header
                  %s275 = sphi 0, %s279
                  %p276 = scmp.ge.s32.totalorder %s275, 1
                  %s280 = sphi %s252, %s252
                  %s281 = sphi %s242, %s242
                $region84: #{causal_self_attention.4} parent=80 // loop_header_branch
                  %278 = sbr.rel (%p276) target = $region88
                $region85: #{causal_self_attention.4} parent=80 // loop_body
                  %v282 = vld [vmem:[%s280] sm:$0xff]
                  %283 = vst [vmem:[%s281] sm:$0xff] %v282
                  %v284 = vld [vmem:[%s280 + $0x18] sm:$0xff]
                  %285 = vst [vmem:[%s281 + $0x8] sm:$0xff] %v284
                $region86: #{causal_self_attention.4} parent=80 // loop_footer
                  %s279 = sadd.s32 1, %s275
                $region87: #{causal_self_attention.4} parent=80 // loop_footer_branch
                  %274 = sbr.rel target = $region83
                $region88: #{causal_self_attention.4} parent=80 // loop_exit
                  _
              $region81: #{causal_self_attention.4} parent=65 // pred_fallthru
                _
              // Predicated region
              $region89: #{causal_self_attention.4} parent=65 // pred_check
                _
              $region90: #{causal_self_attention.4} parent=65 // pred_check_branch
                %287 = sbr.rel target = $region92
              $region91: #{causal_self_attention.4} parent=65 // pred_region
                _
              $region92: #{causal_self_attention.4} parent=65 // pred_fallthru
                _
            $region66: #{causal_self_attention.4} parent=61 // pred_fallthru
              _
            // Predicated region
            $region67: #{causal_self_attention.4} parent=61 // pred_check
              _
            $region68: #{causal_self_attention.4} parent=61 // pred_check_branch
              %258 = sbr.rel target = $region70
            $region69: #{causal_self_attention.4} parent=61 // pred_region
              loop: start=0, step=1, limit=1
              $region71: #{causal_self_attention.4} parent=69 // loop_pre_header
                _
              $region72: #{causal_self_attention.4} parent=69 // loop_header
                %s261 = sphi 0, %s265
                %p262 = scmp.ge.s32.totalorder %s261, 1
                %s266 = sphi %s252, %s252
                %s267 = sphi %s242, %s242
              $region73: #{causal_self_attention.4} parent=69 // loop_header_branch
                %264 = sbr.rel (%p262) target = $region77
              $region74: #{causal_self_attention.4} parent=69 // loop_body
                %v268 = vld [vmem:[%s266] sm:$0xff]
                %269 = vst [vmem:[%s267] sm:$0xff] %v268
                %v270 = vld [vmem:[%s266 + $0x18] sm:$0xff]
                %271 = vst [vmem:[%s267 + $0x8] sm:$0xff] %v270
              $region75: #{causal_self_attention.4} parent=69 // loop_footer
                %s265 = sadd.s32 1, %s261
              $region76: #{causal_self_attention.4} parent=69 // loop_footer_branch
                %260 = sbr.rel target = $region72
              $region77: #{causal_self_attention.4} parent=69 // loop_exit
                _
            $region70: #{causal_self_attention.4} parent=61 // pred_fallthru
              _
          $region62: #{causal_self_attention.4} parent=57 // pred_fallthru
            _
          %288 = vnop
        $region58: #{causal_self_attention.4} parent=15 // pred_fallthru
          _
        // Predicated region
        $region93: #{causal_self_attention.4} parent=15 // pred_check
          %p289 = pneg %p131
        $region94: #{causal_self_attention.4} parent=15 // pred_check_branch
          %291 = sbr.rel (%p289) target = $region96
        $region95: #{causal_self_attention.4} parent=15 // pred_region
          %s292 = sand.u32 %s121, 1
          %s293 = sand.u32 %s121, 1
          %s294 = smul.addr %s293, 16
          %s295 = scalar_lea.vmem [#allocation7], %s294
          %p296 = scmp.lt.s32.totalorder %s19, %s18
          %s297 = scalar_select %p296, %s19, %s18
          %s298 = sadd.s32 %s17, 2
          %s299 = smul.u32 2, %s297
          %s300 = smul.addr %s299, 3
          %s301 = sadd.s32 %s298, %s300
          %s302 = smul.addr %s16, 6
          %s303 = sadd.s32 %s301, %s302
          %s304 = smul.addr %s303, 8
          %s305 = scalar_lea.vmem %s2, %s304
          // Predicated region
          $region97: #{causal_self_attention.4} parent=95 // pred_check
            _
          $region98: #{causal_self_attention.4} parent=95 // pred_check_branch
            %307 = sbr.rel (0) target = $region100
          $region99: #{causal_self_attention.4} parent=95 // pred_region
            // Predicated region
            $region101: #{causal_self_attention.4} parent=99 // pred_check
              _
            $region102: #{causal_self_attention.4} parent=99 // pred_check_branch
              %309 = sbr.rel (0) target = $region104
            $region103: #{causal_self_attention.4} parent=99 // pred_region
              // Predicated region
              $region116: #{causal_self_attention.4} parent=103 // pred_check
                _
              $region117: #{causal_self_attention.4} parent=103 // pred_check_branch
                %326 = sbr.rel (0) target = $region119
              $region118: #{causal_self_attention.4} parent=103 // pred_region
                loop: start=0, step=1, limit=1
                $region120: #{causal_self_attention.4} parent=118 // loop_pre_header
                  _
                $region121: #{causal_self_attention.4} parent=118 // loop_header
                  %s328 = sphi 0, %s332
                  %p329 = scmp.ge.s32.totalorder %s328, 1
                  %s333 = sphi %s305, %s305
                  %s334 = sphi %s295, %s295
                $region122: #{causal_self_attention.4} parent=118 // loop_header_branch
                  %331 = sbr.rel (%p329) target = $region126
                $region123: #{causal_self_attention.4} parent=118 // loop_body
                  %v335 = vld [vmem:[%s333] sm:$0xff]
                  %336 = vst [vmem:[%s334] sm:$0xff] %v335
                  %v337 = vld [vmem:[%s333 + $0x18] sm:$0xff]
                  %338 = vst [vmem:[%s334 + $0x8] sm:$0xff] %v337
                $region124: #{causal_self_attention.4} parent=118 // loop_footer
                  %s332 = sadd.s32 1, %s328
                $region125: #{causal_self_attention.4} parent=118 // loop_footer_branch
                  %327 = sbr.rel target = $region121
                $region126: #{causal_self_attention.4} parent=118 // loop_exit
                  _
              $region119: #{causal_self_attention.4} parent=103 // pred_fallthru
                _
              // Predicated region
              $region127: #{causal_self_attention.4} parent=103 // pred_check
                _
              $region128: #{causal_self_attention.4} parent=103 // pred_check_branch
                %340 = sbr.rel target = $region130
              $region129: #{causal_self_attention.4} parent=103 // pred_region
                _
              $region130: #{causal_self_attention.4} parent=103 // pred_fallthru
                _
            $region104: #{causal_self_attention.4} parent=99 // pred_fallthru
              _
            // Predicated region
            $region105: #{causal_self_attention.4} parent=99 // pred_check
              _
            $region106: #{causal_self_attention.4} parent=99 // pred_check_branch
              %311 = sbr.rel target = $region108
            $region107: #{causal_self_attention.4} parent=99 // pred_region
              loop: start=0, step=1, limit=1
              $region109: #{causal_self_attention.4} parent=107 // loop_pre_header
                _
              $region110: #{causal_self_attention.4} parent=107 // loop_header
                %s314 = sphi 0, %s318
                %p315 = scmp.ge.s32.totalorder %s314, 1
                %s319 = sphi %s305, %s305
                %s320 = sphi %s295, %s295
              $region111: #{causal_self_attention.4} parent=107 // loop_header_branch
                %317 = sbr.rel (%p315) target = $region115
              $region112: #{causal_self_attention.4} parent=107 // loop_body
                %v321 = vld [vmem:[%s319] sm:$0xff]
                %322 = vst [vmem:[%s320] sm:$0xff] %v321
                %v323 = vld [vmem:[%s319 + $0x18] sm:$0xff]
                %324 = vst [vmem:[%s320 + $0x8] sm:$0xff] %v323
              $region113: #{causal_self_attention.4} parent=107 // loop_footer
                %s318 = sadd.s32 1, %s314
              $region114: #{causal_self_attention.4} parent=107 // loop_footer_branch
                %313 = sbr.rel target = $region110
              $region115: #{causal_self_attention.4} parent=107 // loop_exit
                _
            $region108: #{causal_self_attention.4} parent=99 // pred_fallthru
              _
          $region100: #{causal_self_attention.4} parent=95 // pred_fallthru
            _
          %341 = vnop
        $region96: #{causal_self_attention.4} parent=15 // pred_fallthru
          _
      $region16: #{causal_self_attention.4} parent=5 // pred_fallthru
        _
      %p342 = scmp.le.s32.totalorder 1, %s9
      %p343 = scmp.lt.s32.totalorder %s9, 3
      %p344 = pnand %p342, %p343
      %p345 = pneg %p344
      // Predicated region
      $region131: #{causal_self_attention.4} parent=5 // pred_check
        _
      $region132: #{causal_self_attention.4} parent=5 // pred_check_branch
        %347 = sbr.rel (%p344) target = $region134
      $region133: #{causal_self_attention.4} parent=5 // pred_region
        %s348 = ssub.s32 %s9, 1
        %s349 = sand.u32 %s52, 1
        %s350 = sand.u32 %s52, 1
        %s351 = smul.addr %s350, 16
        %s352 = scalar_lea.vmem [#allocation5], %s351
        // Predicated region
        $region135: #{causal_self_attention.4} parent=133 // pred_check
          %p353 = pneg %p65
        $region136: #{causal_self_attention.4} parent=133 // pred_check_branch
          %355 = sbr.rel (%p353) target = $region138
        $region137: #{causal_self_attention.4} parent=133 // pred_region
          _
        $region138: #{causal_self_attention.4} parent=133 // pred_fallthru
          _
        %s356 = sand.u32 %s88, 1
        %s357 = sand.u32 %s88, 1
        %s358 = smul.addr %s357, 16
        %s359 = scalar_lea.vmem [#allocation6], %s358
        // Predicated region
        $region139: #{causal_self_attention.4} parent=133 // pred_check
          %p360 = pneg %p101
        $region140: #{causal_self_attention.4} parent=133 // pred_check_branch
          %362 = sbr.rel (%p360) target = $region142
        $region141: #{causal_self_attention.4} parent=133 // pred_region
          _
        $region142: #{causal_self_attention.4} parent=133 // pred_fallthru
          _
        %s363 = sand.u32 %s124, 1
        %s364 = sand.u32 %s124, 1
        %s365 = smul.addr %s364, 16
        %s366 = scalar_lea.vmem [#allocation7], %s365
        // Predicated region
        $region143: #{causal_self_attention.4} parent=133 // pred_check
          %p367 = pneg %p137
        $region144: #{causal_self_attention.4} parent=133 // pred_check_branch
          %369 = sbr.rel (%p367) target = $region146
        $region145: #{causal_self_attention.4} parent=133 // pred_region
          _
        $region146: #{causal_self_attention.4} parent=133 // pred_fallthru
          _
        %s370 = sand.u32 %s52, 1
        %s371 = sand.u32 %s52, 1
        %s372 = smul.addr %s371, 16
        %s373 = scalar_lea.vmem [#allocation5], %s372
        %p374 = pneg %p65
        %p375 = pneg %p62
        %s376 = sand.u32 %s88, 1
        %s377 = sand.u32 %s88, 1
        %s378 = smul.addr %s377, 16
        %s379 = scalar_lea.vmem [#allocation6], %s378
        %p380 = pneg %p101
        %p381 = pneg %p98
        %s382 = sand.u32 %s124, 1
        %s383 = sand.u32 %s124, 1
        %s384 = smul.addr %s383, 16
        %s385 = scalar_lea.vmem [#allocation7], %s384
        %p386 = pneg %p137
        %p387 = pneg %p134
        %p388 = pneg %p167
        %p389 = pneg %p164
        %s390 = smul.u32 2, %s22
        %p391 = scmp.lt.s32.totalorder %s20, 1
        %s392 = scalar_select %p391, %s20, 1
        %p393 = scmp.lt.s32.totalorder %s390, 1
        %s394 = scalar_select %p393, %s390, 1
        %p395 = scmp.lt.s32.totalorder %s21, 0
        %s396 = scalar_select %p395, %s21, 0
        %s397 = sadd.s32 %s396, %s394
        %s398 = smul.addr %s392, 2
        %s399 = sadd.s32 %s397, %s398
        %s400 = smul.addr %s399, 8
        %s401 = scalar_lea.vmem %s3, %s400
        %s402 = smul.u32 2, %s22
        %p403 = scmp.lt.s32.totalorder %s23, %s22
        %s404 = scalar_select %p403, %s23, %s22
        %s405 = sadd.s32 %s21, 1
        %s406 = smul.u32 2, %s404
        %p407 = scmp.lt.s32.totalorder %s23, %s22
        %s408 = scalar_select %p407, %s23, %s22
        %s409 = sadd.s32 %s21, 2
        %s410 = smul.u32 2, %s408
        %s411 = smul.u32 2, %s22
        %p412 = scmp.lt.s32.totalorder %s20, 1
        %s413 = scalar_select %p412, %s20, 1
        %p414 = scmp.lt.s32.totalorder %s411, 1
        %s415 = scalar_select %p414, %s411, 1
        %p416 = scmp.lt.s32.totalorder %s21, 0
        %s417 = scalar_select %p416, %s21, 0
        %s418 = sadd.s32 %s417, %s415
        %s419 = smul.addr %s413, 2
        %s420 = sadd.s32 %s418, %s419
        %s421 = smul.addr %s420, 8
        %s422 = scalar_lea.vmem %s3, %s421
        %s423 = smul.u32 2, %s22
        %p424 = scmp.eq.s32.totalorder %s23, 0
        // Predicated region
        $region147: #{causal_self_attention.4} parent=133 // pred_check
          %p425 = pneg %p424
        $region148: #{causal_self_attention.4} parent=133 // pred_check_branch
          %427 = sbr.rel (%p425) target = $region150
        $region149: #{causal_self_attention.4} parent=133 // pred_region
          %vm428 = vcmask 7168
          %429 = vst.msk [vmem:[#allocation2] sm:$0xff] %vm428, -1e+30
          %430 = vst.msk [vmem:[#allocation2 + $0x8] sm:$0xff] %vm428, -1e+30
          %431 = vst.msk [vmem:[#allocation2 + $0x10] sm:$0xff] %vm428, -1e+30
          %432 = vst.msk [vmem:[#allocation2 + $0x18] sm:$0xff] %vm428, -1e+30
          %433 = vst.msk [vmem:[#allocation3] sm:$0xff] %vm428, 0.0
          %434 = vst.msk [vmem:[#allocation3 + $0x8] sm:$0xff] %vm428, 0.0
          %435 = vst.msk [vmem:[#allocation3 + $0x10] sm:$0xff] %vm428, 0.0
          %436 = vst.msk [vmem:[#allocation3 + $0x18] sm:$0xff] %vm428, 0.0
          %437 = vst [vmem:[#allocation4] sm:$0xff] 0.0
          %438 = vst [vmem:[#allocation4 + $0x8] sm:$0xff] 0.0
        $region150: #{causal_self_attention.4} parent=133 // pred_fallthru
          _
        %p439 = scmp.lt.s32.totalorder %s23, %s22
        // Predicated region
        $region151: #{causal_self_attention.4} parent=133 // pred_check
          %p440 = pneg %p439
        $region152: #{causal_self_attention.4} parent=133 // pred_check_branch
          %442 = sbr.rel (%p440) target = $region154
        $region153: #{causal_self_attention.4} parent=133 // pred_region
          %v443 = vld [vmem:[%s352] sm:$0xff]
          %v444 = vld [vmem:[%s352 + $0x8] sm:$0xff]
          %v445 = vld [vmem:[%s359] sm:$0xff]
          %v446 = vld [vmem:[%s359 + $0x8] sm:$0xff]
          %v447 = vld [vmem:[%s366] sm:$0xff]
          %v448 = vld [vmem:[%s366 + $0x8] sm:$0xff]
          %v449 = vmul.f32 %v443, 0.125
          %v450 = vmul.f32 %v444, 0.125
          %vm451 = vcmask 523264
          %v453 = vsel %vm451, %v449, 0
          %v456 = vsel %vm451, %v450, 0
          %v459 = vsel %vm451, %v445, 0
          %v462 = vsel %vm451, %v446, 0
          %464 = vmatprep.subr.mxu0 0.0
          %465 = vmatpush1.xpose.msra.mxu0 %v459
          %466 = vmatprep.subr.mxu0 0.0
          %467 = vmatpush1.xpose.msra.mxu0 %v462
          %468 = vmatprep.subr.mxu0 0.0
          %469 = vmatpush1.xpose.msra.mxu0 0.0
          %470 = vmatprep.subr.mxu0 0.0
          %471 = vmatpush1.xpose.msra.mxu0 0.0
          %472 = vmatprep.subr.mxu0 0.0
          %473 = vmatpush1.xpose.msra.mxu0 0.0
          %474 = vmatprep.subr.mxu0 0.0
          %475 = vmatpush1.xpose.msra.mxu0 0.0
          %476 = vmatprep.subr.mxu0 0.0
          %477 = vmatpush1.xpose.msra.mxu0 0.0
          %478 = vmatprep.subr.mxu0 0.0
          %479 = vmatpush1.xpose.msra.mxu0 0.0
          %480 = vmatprep.subr.mxu0 0.0
          %481 = vmatpush1.xpose.msra.mxu0 0.0
          %482 = vmatprep.subr.mxu0 0.0
          %483 = vmatpush1.xpose.msra.mxu0 0.0
          %484 = vmatprep.subr.mxu0 0.0
          %485 = vmatpush1.xpose.msra.mxu0 0.0
          %486 = vmatprep.subr.mxu0 0.0
          %487 = vmatpush1.xpose.msra.mxu0 0.0
          %488 = vmatprep.subr.mxu0 0.0
          %489 = vmatpush1.xpose.msra.mxu0 0.0
          %490 = vmatprep.subr.mxu0 0.0
          %491 = vmatpush1.xpose.msra.mxu0 0.0
          %492 = vmatprep.subr.mxu0 0.0
          %493 = vmatpush1.xpose.msra.mxu0 0.0
          %494 = vmatprep.subr.mxu0 0.0
          %495 = vmatpush1.xpose.msra.mxu0 0.0
          %496 = vmatprep.subr.mxu0 0.0
          %497 = vmatpush1.xpose.msra.mxu0 0.0
          %498 = vmatprep.subr.mxu0 0.0
          %499 = vmatpush1.xpose.msra.mxu0 0.0
          %500 = vmatprep.subr.mxu0 0.0
          %501 = vmatpush1.xpose.msra.mxu0 0.0
          %502 = vmatprep.subr.mxu0 0.0
          %503 = vmatpush1.xpose.msra.mxu0 0.0
          %504 = vmatprep.subr.mxu0 0.0
          %505 = vmatpush1.xpose.msra.mxu0 0.0
          %506 = vmatprep.subr.mxu0 0.0
          %507 = vmatpush1.xpose.msra.mxu0 0.0
          %508 = vmatprep.subr.mxu0 0.0
          %509 = vmatpush1.xpose.msra.mxu0 0.0
          %510 = vmatprep.subr.mxu0 0.0
          %511 = vmatpush1.xpose.msra.mxu0 0.0
          %512 = vmatprep.subr.mxu0 0.0
          %513 = vmatpush1.xpose.msra.mxu0 0.0
          %514 = vmatprep.subr.mxu0 0.0
          %515 = vmatpush1.xpose.msra.mxu0 0.0
          %516 = vmatprep.subr.mxu0 0.0
          %517 = vmatpush1.xpose.msra.mxu0 0.0
          %518 = vmatprep.subr.mxu0 0.0
          %519 = vmatpush1.xpose.msra.mxu0 0.0
          %520 = vmatprep.subr.mxu0 0.0
          %521 = vmatpush1.xpose.msra.mxu0 0.0
          %522 = vmatprep.subr.mxu0 0.0
          %523 = vmatpush1.xpose.msra.mxu0 0.0
          %524 = vmatprep.subr.mxu0 0.0
          %525 = vmatpush1.xpose.msra.mxu0 0.0
          %526 = vmatprep.subr.mxu0 0.0
          %527 = vmatpush1.xpose.msra.mxu0 0.0
          %528 = vmatprep.mubr.f32.mxu0 0.0
          %529 = vmatmul.mubr.f32.gmra.mrb[0].mxu0 %v453
          %v530 = vpop.f32.mrb[0].mxu0
          %v531 = vadd.f32 0.0, %v530
          %v532 = vpop.f32.mrb[0].mxu0
          %533 = vmatprep.mubr.f32.mxu0 0.0
          %534 = vmatmul.mubr.f32.gmra.mrb[0].mxu0 %v456
          %v535 = vpop.f32.mrb[0].mxu0
          %v536 = vadd.f32 0.0, %v535
          %v537 = vpop.f32.mrb[0].mxu0
          %538 = vdwg.mxu0
          %v539 = vld [vmem:[#allocation2] sm:$0xff]
          %v540 = vld [vmem:[#allocation2 + $0x8] sm:$0xff]
          %vm541 = vcmask 130048
          %v542 = vsel %vm541, %v531, -inf
          %543 = vmax.xlane.f32.xlu0 %v542
          %v544 = vpop.xlane.xlu0 %543
          %v545 = vsel %vm541, %v536, -inf
          %546 = vmax.xlane.f32.xlu0 %v545
          %v547 = vpop.xlane.xlu0 %546
          %v548 = vmax.f32 %v539, %v544
          %v549 = vmax.f32 %v540, %v547
          %v550 = vsub.f32 %v539, %v548
          %v551 = vsub.f32 %v540, %v549
          %v552 = vmul.f32 %v550, 1.442695
          %v553 = vpow.pop %v552
          %v554 = vmul.f32 %v551, 1.442695
          %v555 = vpow.pop %v554
          %557 = vset.pattern.permute.xlu0 0
          %558 = vperm.xlu0 %557, %v548
          %v559 = vpop.permute.xlu0 %558
          %562 = vset.pattern.permute.xlu0 0
          %563 = vperm.xlu0 %562, %v549
          %v564 = vpop.permute.xlu0 %563
          %v566 = vsub.f32 %v531, %v559
          %v567 = vsub.f32 %v536, %v564
          %v568 = vmul.f32 %v566, 1.442695
          %v569 = vpow.pop %v568
          %v570 = vmul.f32 %v567, 1.442695
          %v571 = vpow.pop %v570
          %v572 = vld [vmem:[#allocation3] sm:$0xff]
          %v573 = vld [vmem:[#allocation3 + $0x8] sm:$0xff]
          %v574 = vmul.f32 %v553, %v572
          %v575 = vmul.f32 %v555, %v573
          %v576 = vsel %vm541, %v569, 0.0
          %577 = vadd.xlane.f32.xlu0 %v576
          %v578 = vpop.xlane.xlu0 %577
          %v579 = vsel %vm541, %v571, 0.0
          %580 = vadd.xlane.f32.xlu0 %v579
          %v581 = vpop.xlane.xlu0 %580
          %v582 = vadd.f32 %v574, %v578
          %v583 = vadd.f32 %v575, %v581
          %vm584 = vcmask 7168
          %585 = vst.msk [vmem:[#allocation3] sm:$0xff] %vm584, %v582
          %586 = vst.msk [vmem:[#allocation3 + $0x8] sm:$0xff] %vm584, %v583
          %587 = vst.msk [vmem:[#allocation2] sm:$0xff] %vm584, %v548
          %588 = vst.msk [vmem:[#allocation2 + $0x8] sm:$0xff] %vm584, %v549
          %v590 = vsel %vm541, %v569, 0
          %v593 = vsel %vm541, %v571, 0
          %595 = vmatprep.subr.mxu0 0.0
          %596 = vmatpush1.msra.mxu0 %v447
          %597 = vmatprep.subr.mxu0 0.0
          %598 = vmatpush1.msra.mxu0 %v448
          %599 = vmatprep.subr.mxu0 0.0
          %600 = vmatpush1.msra.mxu0 0.0
          %601 = vmatprep.subr.mxu0 0.0
          %602 = vmatpush1.msra.mxu0 0.0
          %603 = vmatprep.subr.mxu0 0.0
          %604 = vmatpush1.msra.mxu0 0.0
          %605 = vmatprep.subr.mxu0 0.0
          %606 = vmatpush1.msra.mxu0 0.0
          %607 = vmatprep.subr.mxu0 0.0
          %608 = vmatpush1.msra.mxu0 0.0
          %609 = vmatprep.subr.mxu0 0.0
          %610 = vmatpush1.msra.mxu0 0.0
          %611 = vmatprep.subr.mxu0 0.0
          %612 = vmatpush1.msra.mxu0 0.0
          %613 = vmatprep.subr.mxu0 0.0
          %614 = vmatpush1.msra.mxu0 0.0
          %615 = vmatprep.subr.mxu0 0.0
          %616 = vmatpush1.msra.mxu0 0.0
          %617 = vmatprep.subr.mxu0 0.0
          %618 = vmatpush1.msra.mxu0 0.0
          %619 = vmatprep.subr.mxu0 0.0
          %620 = vmatpush1.msra.mxu0 0.0
          %621 = vmatprep.subr.mxu0 0.0
          %622 = vmatpush1.msra.mxu0 0.0
          %623 = vmatprep.subr.mxu0 0.0
          %624 = vmatpush1.msra.mxu0 0.0
          %625 = vmatprep.subr.mxu0 0.0
          %626 = vmatpush1.msra.mxu0 0.0
          %627 = vmatprep.subr.mxu0 0.0
          %628 = vmatpush1.msra.mxu0 0.0
          %629 = vmatprep.subr.mxu0 0.0
          %630 = vmatpush1.msra.mxu0 0.0
          %631 = vmatprep.subr.mxu0 0.0
          %632 = vmatpush1.msra.mxu0 0.0
          %633 = vmatprep.subr.mxu0 0.0
          %634 = vmatpush1.msra.mxu0 0.0
          %635 = vmatprep.subr.mxu0 0.0
          %636 = vmatpush1.msra.mxu0 0.0
          %637 = vmatprep.subr.mxu0 0.0
          %638 = vmatpush1.msra.mxu0 0.0
          %639 = vmatprep.subr.mxu0 0.0
          %640 = vmatpush1.msra.mxu0 0.0
          %641 = vmatprep.subr.mxu0 0.0
          %642 = vmatpush1.msra.mxu0 0.0
          %643 = vmatprep.subr.mxu0 0.0
          %644 = vmatpush1.msra.mxu0 0.0
          %645 = vmatprep.subr.mxu0 0.0
          %646 = vmatpush1.msra.mxu0 0.0
          %647 = vmatprep.subr.mxu0 0.0
          %648 = vmatpush1.msra.mxu0 0.0
          %649 = vmatprep.subr.mxu0 0.0
          %650 = vmatpush1.msra.mxu0 0.0
          %651 = vmatprep.subr.mxu0 0.0
          %652 = vmatpush1.msra.mxu0 0.0
          %653 = vmatprep.subr.mxu0 0.0
          %654 = vmatpush1.msra.mxu0 0.0
          %655 = vmatprep.subr.mxu0 0.0
          %656 = vmatpush1.msra.mxu0 0.0
          %657 = vmatprep.subr.mxu0 0.0
          %658 = vmatpush1.msra.mxu0 0.0
          %659 = vmatprep.mubr.f32.mxu0 0.0
          %660 = vmatmul.mubr.f32.gmra.mrb[0].mxu0 %v590
          %v661 = vpop.f32.mrb[0].mxu0
          %v662 = vadd.f32 0.0, %v661
          %v663 = vpop.f32.mrb[0].mxu0
          %664 = vmatprep.mubr.f32.mxu0 0.0
          %665 = vmatmul.mubr.f32.gmra.mrb[0].mxu0 %v593
          %v666 = vpop.f32.mrb[0].mxu0
          %v667 = vadd.f32 0.0, %v666
          %v668 = vpop.f32.mrb[0].mxu0
          %669 = vdwg.mxu0
          %v670 = vld [vmem:[#allocation4] sm:$0xff]
          %v671 = vld [vmem:[#allocation4 + $0x8] sm:$0xff]
          %673 = vset.pattern.permute.xlu0 0
          %674 = vperm.xlu0 %673, %v553
          %v675 = vpop.permute.xlu0 %674
          %678 = vset.pattern.permute.xlu0 0
          %679 = vperm.xlu0 %678, %v555
          %v680 = vpop.permute.xlu0 %679
          %v682 = vmul.f32 %v675, %v670
          %v683 = vmul.f32 %v680, %v671
          %v684 = vadd.f32 %v682, %v662
          %v685 = vadd.f32 %v683, %v667
          %686 = vst.msk [vmem:[#allocation4] sm:$0xff] %vm451, %v684
          %687 = vst.msk [vmem:[#allocation4 + $0x8] sm:$0xff] %vm451, %v685
          %688 = vrot.lane.b32.xlu0 %v449, 64
          %v689 = vpop.permute.xlu0 %688
          %690 = vrot.lane.b32.xlu0 %v450, 64
          %v691 = vpop.permute.xlu0 %690
          %692 = vrot.lane.b32.xlu0 %v445, 64
          %v693 = vpop.permute.xlu0 %692
          %694 = vrot.lane.b32.xlu0 %v446, 64
          %v695 = vpop.permute.xlu0 %694
          %v696 = vsel %vm451, %v689, 0
          %v698 = vsel %vm451, %v691, 0
          %v700 = vsel %vm451, %v693, 0
          %v702 = vsel %vm451, %v695, 0
          %704 = vmatprep.subr.mxu0 0.0
          %705 = vmatpush1.xpose.msra.mxu0 %v700
          %706 = vmatprep.subr.mxu0 0.0
          %707 = vmatpush1.xpose.msra.mxu0 %v702
          %708 = vmatprep.subr.mxu0 0.0
          %709 = vmatpush1.xpose.msra.mxu0 0.0
          %710 = vmatprep.subr.mxu0 0.0
          %711 = vmatpush1.xpose.msra.mxu0 0.0
          %712 = vmatprep.subr.mxu0 0.0
          %713 = vmatpush1.xpose.msra.mxu0 0.0
          %714 = vmatprep.subr.mxu0 0.0
          %715 = vmatpush1.xpose.msra.mxu0 0.0
          %716 = vmatprep.subr.mxu0 0.0
          %717 = vmatpush1.xpose.msra.mxu0 0.0
          %718 = vmatprep.subr.mxu0 0.0
          %719 = vmatpush1.xpose.msra.mxu0 0.0
          %720 = vmatprep.subr.mxu0 0.0
          %721 = vmatpush1.xpose.msra.mxu0 0.0
          %722 = vmatprep.subr.mxu0 0.0
          %723 = vmatpush1.xpose.msra.mxu0 0.0
          %724 = vmatprep.subr.mxu0 0.0
          %725 = vmatpush1.xpose.msra.mxu0 0.0
          %726 = vmatprep.subr.mxu0 0.0
          %727 = vmatpush1.xpose.msra.mxu0 0.0
          %728 = vmatprep.subr.mxu0 0.0
          %729 = vmatpush1.xpose.msra.mxu0 0.0
          %730 = vmatprep.subr.mxu0 0.0
          %731 = vmatpush1.xpose.msra.mxu0 0.0
          %732 = vmatprep.subr.mxu0 0.0
          %733 = vmatpush1.xpose.msra.mxu0 0.0
          %734 = vmatprep.subr.mxu0 0.0
          %735 = vmatpush1.xpose.msra.mxu0 0.0
          %736 = vmatprep.subr.mxu0 0.0
          %737 = vmatpush1.xpose.msra.mxu0 0.0
          %738 = vmatprep.subr.mxu0 0.0
          %739 = vmatpush1.xpose.msra.mxu0 0.0
          %740 = vmatprep.subr.mxu0 0.0
          %741 = vmatpush1.xpose.msra.mxu0 0.0
          %742 = vmatprep.subr.mxu0 0.0
          %743 = vmatpush1.xpose.msra.mxu0 0.0
          %744 = vmatprep.subr.mxu0 0.0
          %745 = vmatpush1.xpose.msra.mxu0 0.0
          %746 = vmatprep.subr.mxu0 0.0
          %747 = vmatpush1.xpose.msra.mxu0 0.0
          %748 = vmatprep.subr.mxu0 0.0
          %749 = vmatpush1.xpose.msra.mxu0 0.0
          %750 = vmatprep.subr.mxu0 0.0
          %751 = vmatpush1.xpose.msra.mxu0 0.0
          %752 = vmatprep.subr.mxu0 0.0
          %753 = vmatpush1.xpose.msra.mxu0 0.0
          %754 = vmatprep.subr.mxu0 0.0
          %755 = vmatpush1.xpose.msra.mxu0 0.0
          %756 = vmatprep.subr.mxu0 0.0
          %757 = vmatpush1.xpose.msra.mxu0 0.0
          %758 = vmatprep.subr.mxu0 0.0
          %759 = vmatpush1.xpose.msra.mxu0 0.0
          %760 = vmatprep.subr.mxu0 0.0
          %761 = vmatpush1.xpose.msra.mxu0 0.0
          %762 = vmatprep.subr.mxu0 0.0
          %763 = vmatpush1.xpose.msra.mxu0 0.0
          %764 = vmatprep.subr.mxu0 0.0
          %765 = vmatpush1.xpose.msra.mxu0 0.0
          %766 = vmatprep.subr.mxu0 0.0
          %767 = vmatpush1.xpose.msra.mxu0 0.0
          %768 = vmatprep.mubr.f32.mxu0 0.0
          %769 = vmatmul.mubr.f32.gmra.mrb[0].mxu0 %v696
          %v770 = vpop.f32.mrb[0].mxu0
          %v771 = vadd.f32 0.0, %v770
          %v772 = vpop.f32.mrb[0].mxu0
          %773 = vmatprep.mubr.f32.mxu0 0.0
          %774 = vmatmul.mubr.f32.gmra.mrb[0].mxu0 %v698
          %v775 = vpop.f32.mrb[0].mxu0
          %v776 = vadd.f32 0.0, %v775
          %v777 = vpop.f32.mrb[0].mxu0
          %778 = vdwg.mxu0
          %s779 = scalar_lea.vmem [#allocation2], 16
          %v780 = vld [vmem:[%s779] sm:$0xff]
          %v781 = vld [vmem:[%s779 + $0x8] sm:$0xff]
          %v782 = vsel %vm541, %v771, -inf
          %783 = vmax.xlane.f32.xlu0 %v782
          %v784 = vpop.xlane.xlu0 %783
          %v785 = vsel %vm541, %v776, -inf
          %786 = vmax.xlane.f32.xlu0 %v785
          %v787 = vpop.xlane.xlu0 %786
          %v788 = vmax.f32 %v780, %v784
          %v789 = vmax.f32 %v781, %v787
          %v790 = vsub.f32 %v780, %v788
          %v791 = vsub.f32 %v781, %v789
          %v792 = vmul.f32 %v790, 1.442695
          %v793 = vpow.pop %v792
          %v794 = vmul.f32 %v791, 1.442695
          %v795 = vpow.pop %v794
          %797 = vset.pattern.permute.xlu0 0
          %798 = vperm.xlu0 %797, %v788
          %v799 = vpop.permute.xlu0 %798
          %802 = vset.pattern.permute.xlu0 0
          %803 = vperm.xlu0 %802, %v789
          %v804 = vpop.permute.xlu0 %803
          %v806 = vsub.f32 %v771, %v799
          %v807 = vsub.f32 %v776, %v804
          %v808 = vmul.f32 %v806, 1.442695
          %v809 = vpow.pop %v808
          %v810 = vmul.f32 %v807, 1.442695
          %v811 = vpow.pop %v810
          %s812 = scalar_lea.vmem [#allocation3], 16
          %v813 = vld [vmem:[%s812] sm:$0xff]
          %v814 = vld [vmem:[%s812 + $0x8] sm:$0xff]
          %v815 = vmul.f32 %v793, %v813
          %v816 = vmul.f32 %v795, %v814
          %v817 = vsel %vm541, %v809, 0.0
          %818 = vadd.xlane.f32.xlu0 %v817
          %v819 = vpop.xlane.xlu0 %818
          %v820 = vsel %vm541, %v811, 0.0
          %821 = vadd.xlane.f32.xlu0 %v820
          %v822 = vpop.xlane.xlu0 %821
          %v823 = vadd.f32 %v815, %v819
          %v824 = vadd.f32 %v816, %v822
          %825 = vst.msk [vmem:[%s812] sm:$0xff] %vm584, %v823
          %826 = vst.msk [vmem:[%s812 + $0x8] sm:$0xff] %vm584, %v824
          %827 = vst.msk [vmem:[%s779] sm:$0xff] %vm584, %v788
          %828 = vst.msk [vmem:[%s779 + $0x8] sm:$0xff] %vm584, %v789
          %831 = vrot.lane.b32.xlu0 %v447, 64
          %v832 = vpop.permute.xlu0 %831
          %833 = vrot.lane.b32.xlu0 %v448, 64
          %v834 = vpop.permute.xlu0 %833
          %v838 = vsel %vm541, %v809, 0
          %v841 = vsel %vm541, %v811, 0
          %843 = vmatprep.subr.mxu0 0.0
          %844 = vmatpush1.msra.mxu0 %v832
          %845 = vmatprep.subr.mxu0 0.0
          %846 = vmatpush1.msra.mxu0 %v834
          %847 = vmatprep.subr.mxu0 0.0
          %848 = vmatpush1.msra.mxu0 0.0
          %849 = vmatprep.subr.mxu0 0.0
          %850 = vmatpush1.msra.mxu0 0.0
          %851 = vmatprep.subr.mxu0 0.0
          %852 = vmatpush1.msra.mxu0 0.0
          %853 = vmatprep.subr.mxu0 0.0
          %854 = vmatpush1.msra.mxu0 0.0
          %855 = vmatprep.subr.mxu0 0.0
          %856 = vmatpush1.msra.mxu0 0.0
          %857 = vmatprep.subr.mxu0 0.0
          %858 = vmatpush1.msra.mxu0 0.0
          %859 = vmatprep.subr.mxu0 0.0
          %860 = vmatpush1.msra.mxu0 0.0
          %861 = vmatprep.subr.mxu0 0.0
          %862 = vmatpush1.msra.mxu0 0.0
          %863 = vmatprep.subr.mxu0 0.0
          %864 = vmatpush1.msra.mxu0 0.0
          %865 = vmatprep.subr.mxu0 0.0
          %866 = vmatpush1.msra.mxu0 0.0
          %867 = vmatprep.subr.mxu0 0.0
          %868 = vmatpush1.msra.mxu0 0.0
          %869 = vmatprep.subr.mxu0 0.0
          %870 = vmatpush1.msra.mxu0 0.0
          %871 = vmatprep.subr.mxu0 0.0
          %872 = vmatpush1.msra.mxu0 0.0
          %873 = vmatprep.subr.mxu0 0.0
          %874 = vmatpush1.msra.mxu0 0.0
          %875 = vmatprep.subr.mxu0 0.0
          %876 = vmatpush1.msra.mxu0 0.0
          %877 = vmatprep.subr.mxu0 0.0
          %878 = vmatpush1.msra.mxu0 0.0
          %879 = vmatprep.subr.mxu0 0.0
          %880 = vmatpush1.msra.mxu0 0.0
          %881 = vmatprep.subr.mxu0 0.0
          %882 = vmatpush1.msra.mxu0 0.0
          %883 = vmatprep.subr.mxu0 0.0
          %884 = vmatpush1.msra.mxu0 0.0
          %885 = vmatprep.subr.mxu0 0.0
          %886 = vmatpush1.msra.mxu0 0.0
          %887 = vmatprep.subr.mxu0 0.0
          %888 = vmatpush1.msra.mxu0 0.0
          %889 = vmatprep.subr.mxu0 0.0
          %890 = vmatpush1.msra.mxu0 0.0
          %891 = vmatprep.subr.mxu0 0.0
          %892 = vmatpush1.msra.mxu0 0.0
          %893 = vmatprep.subr.mxu0 0.0
          %894 = vmatpush1.msra.mxu0 0.0
          %895 = vmatprep.subr.mxu0 0.0
          %896 = vmatpush1.msra.mxu0 0.0
          %897 = vmatprep.subr.mxu0 0.0
          %898 = vmatpush1.msra.mxu0 0.0
          %899 = vmatprep.subr.mxu0 0.0
          %900 = vmatpush1.msra.mxu0 0.0
          %901 = vmatprep.subr.mxu0 0.0
          %902 = vmatpush1.msra.mxu0 0.0
          %903 = vmatprep.subr.mxu0 0.0
          %904 = vmatpush1.msra.mxu0 0.0
          %905 = vmatprep.subr.mxu0 0.0
          %906 = vmatpush1.msra.mxu0 0.0
          %907 = vmatprep.mubr.f32.mxu0 0.0
          %908 = vmatmul.mubr.f32.gmra.mrb[0].mxu0 %v838
          %v909 = vpop.f32.mrb[0].mxu0
          %v910 = vadd.f32 0.0, %v909
          %v911 = vpop.f32.mrb[0].mxu0
          %912 = vmatprep.mubr.f32.mxu0 0.0
          %913 = vmatmul.mubr.f32.gmra.mrb[0].mxu0 %v841
          %v914 = vpop.f32.mrb[0].mxu0
          %v915 = vadd.f32 0.0, %v914
          %v916 = vpop.f32.mrb[0].mxu0
          %917 = vdwg.mxu0
          %v918 = vld [vmem:[#allocation4] sm:$0xff]
          %v919 = vld [vmem:[#allocation4 + $0x8] sm:$0xff]
          %921 = vset.pattern.permute.xlu0 0
          %922 = vperm.xlu0 %921, %v793
          %v923 = vpop.permute.xlu0 %922
          %926 = vset.pattern.permute.xlu0 0
          %927 = vperm.xlu0 %926, %v795
          %v928 = vpop.permute.xlu0 %927
          %v930 = vmul.f32 %v923, %v918
          %v931 = vmul.f32 %v928, %v919
          %934 = vrot.lane.b32.xlu0 %v910, 64
          %v935 = vpop.permute.xlu0 %934
          %936 = vrot.lane.b32.xlu0 %v915, 64
          %v937 = vpop.permute.xlu0 %936
          %v940 = vadd.f32 %v930, %v935
          %v941 = vadd.f32 %v931, %v937
          %vm942 = vcmask 1048064
          %943 = vst.msk [vmem:[#allocation4] sm:$0xff] %vm942, %v940
          %944 = vst.msk [vmem:[#allocation4 + $0x8] sm:$0xff] %vm942, %v941
        $region154: #{causal_self_attention.4} parent=133 // pred_fallthru
          _
        %p945 = scmp.eq.s32.totalorder %s23, %s22
        // Predicated region
        $region155: #{causal_self_attention.4} parent=133 // pred_check
          %p946 = pneg %p945
        $region156: #{causal_self_attention.4} parent=133 // pred_check_branch
          %948 = sbr.rel (%p946) target = $region158
        $region157: #{causal_self_attention.4} parent=133 // pred_region
          %v949 = vld [vmem:[%s352] sm:$0xff]
          %v950 = vld [vmem:[%s352 + $0x8] sm:$0xff]
          %v951 = vld [vmem:[%s359] sm:$0xff]
          %v952 = vld [vmem:[%s359 + $0x8] sm:$0xff]
          %v953 = vld [vmem:[%s366] sm:$0xff]
          %v954 = vld [vmem:[%s366 + $0x8] sm:$0xff]
          %v955 = vlaneseq
          %v956 = vshrl.u32 %v955, 7
          %v957 = vadd.s32 %v956, 8
          %v958 = vlaneseq
          %v959 = vand.u32 %v958, 127
          %vm960 = vcmp.le.s32.totalorder %v959, %v956
          %vm961 = vcmp.le.s32.totalorder %v959, %v957
          %v962 = vmul.f32 %v949, 0.125
          %v963 = vmul.f32 %v950, 0.125
          %vm964 = vcmask 523264
          %v966 = vsel %vm964, %v962, 0
          %v969 = vsel %vm964, %v963, 0
          %v972 = vsel %vm964, %v951, 0
          %v975 = vsel %vm964, %v952, 0
          %977 = vmatprep.subr.mxu0 0.0
          %978 = vmatpush1.xpose.msra.mxu0 %v972
          %979 = vmatprep.subr.mxu0 0.0
          %980 = vmatpush1.xpose.msra.mxu0 %v975
          %981 = vmatprep.subr.mxu0 0.0
          %982 = vmatpush1.xpose.msra.mxu0 0.0
          %983 = vmatprep.subr.mxu0 0.0
          %984 = vmatpush1.xpose.msra.mxu0 0.0
          %985 = vmatprep.subr.mxu0 0.0
          %986 = vmatpush1.xpose.msra.mxu0 0.0
          %987 = vmatprep.subr.mxu0 0.0
          %988 = vmatpush1.xpose.msra.mxu0 0.0
          %989 = vmatprep.subr.mxu0 0.0
          %990 = vmatpush1.xpose.msra.mxu0 0.0
          %991 = vmatprep.subr.mxu0 0.0
          %992 = vmatpush1.xpose.msra.mxu0 0.0
          %993 = vmatprep.subr.mxu0 0.0
          %994 = vmatpush1.xpose.msra.mxu0 0.0
          %995 = vmatprep.subr.mxu0 0.0
          %996 = vmatpush1.xpose.msra.mxu0 0.0
          %997 = vmatprep.subr.mxu0 0.0
          %998 = vmatpush1.xpose.msra.mxu0 0.0
          %999 = vmatprep.subr.mxu0 0.0
          %1000 = vmatpush1.xpose.msra.mxu0 0.0
          %1001 = vmatprep.subr.mxu0 0.0
          %1002 = vmatpush1.xpose.msra.mxu0 0.0
          %1003 = vmatprep.subr.mxu0 0.0
          %1004 = vmatpush1.xpose.msra.mxu0 0.0
          %1005 = vmatprep.subr.mxu0 0.0
          %1006 = vmatpush1.xpose.msra.mxu0 0.0
          %1007 = vmatprep.subr.mxu0 0.0
          %1008 = vmatpush1.xpose.msra.mxu0 0.0
          %1009 = vmatprep.subr.mxu0 0.0
          %1010 = vmatpush1.xpose.msra.mxu0 0.0
          %1011 = vmatprep.subr.mxu0 0.0
          %1012 = vmatpush1.xpose.msra.mxu0 0.0
          %1013 = vmatprep.subr.mxu0 0.0
          %1014 = vmatpush1.xpose.msra.mxu0 0.0
          %1015 = vmatprep.subr.mxu0 0.0
          %1016 = vmatpush1.xpose.msra.mxu0 0.0
          %1017 = vmatprep.subr.mxu0 0.0
          %1018 = vmatpush1.xpose.msra.mxu0 0.0
          %1019 = vmatprep.subr.mxu0 0.0
          %1020 = vmatpush1.xpose.msra.mxu0 0.0
          %1021 = vmatprep.subr.mxu0 0.0
          %1022 = vmatpush1.xpose.msra.mxu0 0.0
          %1023 = vmatprep.subr.mxu0 0.0
          %1024 = vmatpush1.xpose.msra.mxu0 0.0
          %1025 = vmatprep.subr.mxu0 0.0
          %1026 = vmatpush1.xpose.msra.mxu0 0.0
          %1027 = vmatprep.subr.mxu0 0.0
          %1028 = vmatpush1.xpose.msra.mxu0 0.0
          %1029 = vmatprep.subr.mxu0 0.0
          %1030 = vmatpush1.xpose.msra.mxu0 0.0
          %1031 = vmatprep.subr.mxu0 0.0
          %1032 = vmatpush1.xpose.msra.mxu0 0.0
          %1033 = vmatprep.subr.mxu0 0.0
          %1034 = vmatpush1.xpose.msra.mxu0 0.0
          %1035 = vmatprep.subr.mxu0 0.0
          %1036 = vmatpush1.xpose.msra.mxu0 0.0
          %1037 = vmatprep.subr.mxu0 0.0
          %1038 = vmatpush1.xpose.msra.mxu0 0.0
          %1039 = vmatprep.subr.mxu0 0.0
          %1040 = vmatpush1.xpose.msra.mxu0 0.0
          %1041 = vmatprep.mubr.f32.mxu0 0.0
          %1042 = vmatmul.mubr.f32.gmra.mrb[0].mxu0 %v966
          %v1043 = vpop.f32.mrb[0].mxu0
          %v1044 = vadd.f32 0.0, %v1043
          %v1045 = vpop.f32.mrb[0].mxu0
          %1046 = vmatprep.mubr.f32.mxu0 0.0
          %1047 = vmatmul.mubr.f32.gmra.mrb[0].mxu0 %v969
          %v1048 = vpop.f32.mrb[0].mxu0
          %v1049 = vadd.f32 0.0, %v1048
          %v1050 = vpop.f32.mrb[0].mxu0
          %1051 = vdwg.mxu0
          %v1052 = vsel %vm960, %v1044, -1e+30
          %v1053 = vsel %vm961, %v1049, -1e+30
          %v1054 = vld [vmem:[#allocation2] sm:$0xff]
          %v1055 = vld [vmem:[#allocation2 + $0x8] sm:$0xff]
          %vm1056 = vcmask 130048
          %v1057 = vsel %vm1056, %v1052, -inf
          %1058 = vmax.xlane.f32.xlu0 %v1057
          %v1059 = vpop.xlane.xlu0 %1058
          %v1060 = vsel %vm1056, %v1053, -inf
          %1061 = vmax.xlane.f32.xlu0 %v1060
          %v1062 = vpop.xlane.xlu0 %1061
          %v1063 = vmax.f32 %v1054, %v1059
          %v1064 = vmax.f32 %v1055, %v1062
          %v1065 = vsub.f32 %v1054, %v1063
          %v1066 = vsub.f32 %v1055, %v1064
          %v1067 = vmul.f32 %v1065, 1.442695
          %v1068 = vpow.pop %v1067
          %v1069 = vmul.f32 %v1066, 1.442695
          %v1070 = vpow.pop %v1069
          %1072 = vset.pattern.permute.xlu0 0
          %1073 = vperm.xlu0 %1072, %v1063
          %v1074 = vpop.permute.xlu0 %1073
          %1077 = vset.pattern.permute.xlu0 0
          %1078 = vperm.xlu0 %1077, %v1064
          %v1079 = vpop.permute.xlu0 %1078
          %v1081 = vsub.f32 %v1052, %v1074
          %v1082 = vsub.f32 %v1053, %v1079
          %v1083 = vmul.f32 %v1081, 1.442695
          %v1084 = vpow.pop %v1083
          %v1085 = vmul.f32 %v1082, 1.442695
          %v1086 = vpow.pop %v1085
          %v1087 = vld [vmem:[#allocation3] sm:$0xff]
          %v1088 = vld [vmem:[#allocation3 + $0x8] sm:$0xff]
          %v1089 = vmul.f32 %v1068, %v1087
          %v1090 = vmul.f32 %v1070, %v1088
          %v1091 = vsel %vm1056, %v1084, 0.0
          %1092 = vadd.xlane.f32.xlu0 %v1091
          %v1093 = vpop.xlane.xlu0 %1092
          %v1094 = vsel %vm1056, %v1086, 0.0
          %1095 = vadd.xlane.f32.xlu0 %v1094
          %v1096 = vpop.xlane.xlu0 %1095
          %v1097 = vadd.f32 %v1089, %v1093
          %v1098 = vadd.f32 %v1090, %v1096
          %vm1099 = vcmask 7168
          %1100 = vst.msk [vmem:[#allocation3] sm:$0xff] %vm1099, %v1097
          %1101 = vst.msk [vmem:[#allocation3 + $0x8] sm:$0xff] %vm1099, %v1098
          %1102 = vst.msk [vmem:[#allocation2] sm:$0xff] %vm1099, %v1063
          %1103 = vst.msk [vmem:[#allocation2 + $0x8] sm:$0xff] %vm1099, %v1064
          %v1105 = vsel %vm1056, %v1084, 0
          %v1108 = vsel %vm1056, %v1086, 0
          %1110 = vmatprep.subr.mxu0 0.0
          %1111 = vmatpush1.msra.mxu0 %v953
          %1112 = vmatprep.subr.mxu0 0.0
          %1113 = vmatpush1.msra.mxu0 %v954
          %1114 = vmatprep.subr.mxu0 0.0
          %1115 = vmatpush1.msra.mxu0 0.0
          %1116 = vmatprep.subr.mxu0 0.0
          %1117 = vmatpush1.msra.mxu0 0.0
          %1118 = vmatprep.subr.mxu0 0.0
          %1119 = vmatpush1.msra.mxu0 0.0
          %1120 = vmatprep.subr.mxu0 0.0
          %1121 = vmatpush1.msra.mxu0 0.0
          %1122 = vmatprep.subr.mxu0 0.0
          %1123 = vmatpush1.msra.mxu0 0.0
          %1124 = vmatprep.subr.mxu0 0.0
          %1125 = vmatpush1.msra.mxu0 0.0
          %1126 = vmatprep.subr.mxu0 0.0
          %1127 = vmatpush1.msra.mxu0 0.0
          %1128 = vmatprep.subr.mxu0 0.0
          %1129 = vmatpush1.msra.mxu0 0.0
          %1130 = vmatprep.subr.mxu0 0.0
          %1131 = vmatpush1.msra.mxu0 0.0
          %1132 = vmatprep.subr.mxu0 0.0
          %1133 = vmatpush1.msra.mxu0 0.0
          %1134 = vmatprep.subr.mxu0 0.0
          %1135 = vmatpush1.msra.mxu0 0.0
          %1136 = vmatprep.subr.mxu0 0.0
          %1137 = vmatpush1.msra.mxu0 0.0
          %1138 = vmatprep.subr.mxu0 0.0
          %1139 = vmatpush1.msra.mxu0 0.0
          %1140 = vmatprep.subr.mxu0 0.0
          %1141 = vmatpush1.msra.mxu0 0.0
          %1142 = vmatprep.subr.mxu0 0.0
          %1143 = vmatpush1.msra.mxu0 0.0
          %1144 = vmatprep.subr.mxu0 0.0
          %1145 = vmatpush1.msra.mxu0 0.0
          %1146 = vmatprep.subr.mxu0 0.0
          %1147 = vmatpush1.msra.mxu0 0.0
          %1148 = vmatprep.subr.mxu0 0.0
          %1149 = vmatpush1.msra.mxu0 0.0
          %1150 = vmatprep.subr.mxu0 0.0
          %1151 = vmatpush1.msra.mxu0 0.0
          %1152 = vmatprep.subr.mxu0 0.0
          %1153 = vmatpush1.msra.mxu0 0.0
          %1154 = vmatprep.subr.mxu0 0.0
          %1155 = vmatpush1.msra.mxu0 0.0
          %1156 = vmatprep.subr.mxu0 0.0
          %1157 = vmatpush1.msra.mxu0 0.0
          %1158 = vmatprep.subr.mxu0 0.0
          %1159 = vmatpush1.msra.mxu0 0.0
          %1160 = vmatprep.subr.mxu0 0.0
          %1161 = vmatpush1.msra.mxu0 0.0
          %1162 = vmatprep.subr.mxu0 0.0
          %1163 = vmatpush1.msra.mxu0 0.0
          %1164 = vmatprep.subr.mxu0 0.0
          %1165 = vmatpush1.msra.mxu0 0.0
          %1166 = vmatprep.subr.mxu0 0.0
          %1167 = vmatpush1.msra.mxu0 0.0
          %1168 = vmatprep.subr.mxu0 0.0
          %1169 = vmatpush1.msra.mxu0 0.0
          %1170 = vmatprep.subr.mxu0 0.0
          %1171 = vmatpush1.msra.mxu0 0.0
          %1172 = vmatprep.subr.mxu0 0.0
          %1173 = vmatpush1.msra.mxu0 0.0
          %1174 = vmatprep.mubr.f32.mxu0 0.0
          %1175 = vmatmul.mubr.f32.gmra.mrb[0].mxu0 %v1105
          %v1176 = vpop.f32.mrb[0].mxu0
          %v1177 = vadd.f32 0.0, %v1176
          %v1178 = vpop.f32.mrb[0].mxu0
          %1179 = vmatprep.mubr.f32.mxu0 0.0
          %1180 = vmatmul.mubr.f32.gmra.mrb[0].mxu0 %v1108
          %v1181 = vpop.f32.mrb[0].mxu0
          %v1182 = vadd.f32 0.0, %v1181
          %v1183 = vpop.f32.mrb[0].mxu0
          %1184 = vdwg.mxu0
          %v1185 = vld [vmem:[#allocation4] sm:$0xff]
          %v1186 = vld [vmem:[#allocation4 + $0x8] sm:$0xff]
          %1188 = vset.pattern.permute.xlu0 0
          %1189 = vperm.xlu0 %1188, %v1068
          %v1190 = vpop.permute.xlu0 %1189
          %1193 = vset.pattern.permute.xlu0 0
          %1194 = vperm.xlu0 %1193, %v1070
          %v1195 = vpop.permute.xlu0 %1194
          %v1197 = vmul.f32 %v1190, %v1185
          %v1198 = vmul.f32 %v1195, %v1186
          %v1199 = vadd.f32 %v1197, %v1177
          %v1200 = vadd.f32 %v1198, %v1182
          %1201 = vst.msk [vmem:[#allocation4] sm:$0xff] %vm964, %v1199
          %1202 = vst.msk [vmem:[#allocation4 + $0x8] sm:$0xff] %vm964, %v1200
          %1203 = vrot.lane.b32.xlu0 %v962, 64
          %v1204 = vpop.permute.xlu0 %1203
          %1205 = vrot.lane.b32.xlu0 %v963, 64
          %v1206 = vpop.permute.xlu0 %1205
          %1207 = vrot.lane.b32.xlu0 %v951, 64
          %v1208 = vpop.permute.xlu0 %1207
          %1209 = vrot.lane.b32.xlu0 %v952, 64
          %v1210 = vpop.permute.xlu0 %1209
          %v1211 = vsel %vm964, %v1204, 0
          %v1213 = vsel %vm964, %v1206, 0
          %v1215 = vsel %vm964, %v1208, 0
          %v1217 = vsel %vm964, %v1210, 0
          %1219 = vmatprep.subr.mxu0 0.0
          %1220 = vmatpush1.xpose.msra.mxu0 %v1215
          %1221 = vmatprep.subr.mxu0 0.0
          %1222 = vmatpush1.xpose.msra.mxu0 %v1217
          %1223 = vmatprep.subr.mxu0 0.0
          %1224 = vmatpush1.xpose.msra.mxu0 0.0
          %1225 = vmatprep.subr.mxu0 0.0
          %1226 = vmatpush1.xpose.msra.mxu0 0.0
          %1227 = vmatprep.subr.mxu0 0.0
          %1228 = vmatpush1.xpose.msra.mxu0 0.0
          %1229 = vmatprep.subr.mxu0 0.0
          %1230 = vmatpush1.xpose.msra.mxu0 0.0
          %1231 = vmatprep.subr.mxu0 0.0
          %1232 = vmatpush1.xpose.msra.mxu0 0.0
          %1233 = vmatprep.subr.mxu0 0.0
          %1234 = vmatpush1.xpose.msra.mxu0 0.0
          %1235 = vmatprep.subr.mxu0 0.0
          %1236 = vmatpush1.xpose.msra.mxu0 0.0
          %1237 = vmatprep.subr.mxu0 0.0
          %1238 = vmatpush1.xpose.msra.mxu0 0.0
          %1239 = vmatprep.subr.mxu0 0.0
          %1240 = vmatpush1.xpose.msra.mxu0 0.0
          %1241 = vmatprep.subr.mxu0 0.0
          %1242 = vmatpush1.xpose.msra.mxu0 0.0
          %1243 = vmatprep.subr.mxu0 0.0
          %1244 = vmatpush1.xpose.msra.mxu0 0.0
          %1245 = vmatprep.subr.mxu0 0.0
          %1246 = vmatpush1.xpose.msra.mxu0 0.0
          %1247 = vmatprep.subr.mxu0 0.0
          %1248 = vmatpush1.xpose.msra.mxu0 0.0
          %1249 = vmatprep.subr.mxu0 0.0
          %1250 = vmatpush1.xpose.msra.mxu0 0.0
          %1251 = vmatprep.subr.mxu0 0.0
          %1252 = vmatpush1.xpose.msra.mxu0 0.0
          %1253 = vmatprep.subr.mxu0 0.0
          %1254 = vmatpush1.xpose.msra.mxu0 0.0
          %1255 = vmatprep.subr.mxu0 0.0
          %1256 = vmatpush1.xpose.msra.mxu0 0.0
          %1257 = vmatprep.subr.mxu0 0.0
          %1258 = vmatpush1.xpose.msra.mxu0 0.0
          %1259 = vmatprep.subr.mxu0 0.0
          %1260 = vmatpush1.xpose.msra.mxu0 0.0
          %1261 = vmatprep.subr.mxu0 0.0
          %1262 = vmatpush1.xpose.msra.mxu0 0.0
          %1263 = vmatprep.subr.mxu0 0.0
          %1264 = vmatpush1.xpose.msra.mxu0 0.0
          %1265 = vmatprep.subr.mxu0 0.0
          %1266 = vmatpush1.xpose.msra.mxu0 0.0
          %1267 = vmatprep.subr.mxu0 0.0
          %1268 = vmatpush1.xpose.msra.mxu0 0.0
          %1269 = vmatprep.subr.mxu0 0.0
          %1270 = vmatpush1.xpose.msra.mxu0 0.0
          %1271 = vmatprep.subr.mxu0 0.0
          %1272 = vmatpush1.xpose.msra.mxu0 0.0
          %1273 = vmatprep.subr.mxu0 0.0
          %1274 = vmatpush1.xpose.msra.mxu0 0.0
          %1275 = vmatprep.subr.mxu0 0.0
          %1276 = vmatpush1.xpose.msra.mxu0 0.0
          %1277 = vmatprep.subr.mxu0 0.0
          %1278 = vmatpush1.xpose.msra.mxu0 0.0
          %1279 = vmatprep.subr.mxu0 0.0
          %1280 = vmatpush1.xpose.msra.mxu0 0.0
          %1281 = vmatprep.subr.mxu0 0.0
          %1282 = vmatpush1.xpose.msra.mxu0 0.0
          %1283 = vmatprep.mubr.f32.mxu0 0.0
          %1284 = vmatmul.mubr.f32.gmra.mrb[0].mxu0 %v1211
          %v1285 = vpop.f32.mrb[0].mxu0
          %v1286 = vadd.f32 0.0, %v1285
          %v1287 = vpop.f32.mrb[0].mxu0
          %1288 = vmatprep.mubr.f32.mxu0 0.0
          %1289 = vmatmul.mubr.f32.gmra.mrb[0].mxu0 %v1213
          %v1290 = vpop.f32.mrb[0].mxu0
          %v1291 = vadd.f32 0.0, %v1290
          %v1292 = vpop.f32.mrb[0].mxu0
          %1293 = vdwg.mxu0
          %v1294 = vsel %vm960, %v1286, -1e+30
          %v1295 = vsel %vm961, %v1291, -1e+30
          %s1296 = scalar_lea.vmem [#allocation2], 16
          %v1297 = vld [vmem:[%s1296] sm:$0xff]
          %v1298 = vld [vmem:[%s1296 + $0x8] sm:$0xff]
          %v1299 = vsel %vm1056, %v1294, -inf
          %1300 = vmax.xlane.f32.xlu0 %v1299
          %v1301 = vpop.xlane.xlu0 %1300
          %v1302 = vsel %vm1056, %v1295, -inf
          %1303 = vmax.xlane.f32.xlu0 %v1302
          %v1304 = vpop.xlane.xlu0 %1303
          %v1305 = vmax.f32 %v1297, %v1301
          %v1306 = vmax.f32 %v1298, %v1304
          %v1307 = vsub.f32 %v1297, %v1305
          %v1308 = vsub.f32 %v1298, %v1306
          %v1309 = vmul.f32 %v1307, 1.442695
          %v1310 = vpow.pop %v1309
          %v1311 = vmul.f32 %v1308, 1.442695
          %v1312 = vpow.pop %v1311
          %1314 = vset.pattern.permute.xlu0 0
          %1315 = vperm.xlu0 %1314, %v1305
          %v1316 = vpop.permute.xlu0 %1315
          %1319 = vset.pattern.permute.xlu0 0
          %1320 = vperm.xlu0 %1319, %v1306
          %v1321 = vpop.permute.xlu0 %1320
          %v1323 = vsub.f32 %v1294, %v1316
          %v1324 = vsub.f32 %v1295, %v1321
          %v1325 = vmul.f32 %v1323, 1.442695
          %v1326 = vpow.pop %v1325
          %v1327 = vmul.f32 %v1324, 1.442695
          %v1328 = vpow.pop %v1327
          %s1329 = scalar_lea.vmem [#allocation3], 16
          %v1330 = vld [vmem:[%s1329] sm:$0xff]
          %v1331 = vld [vmem:[%s1329 + $0x8] sm:$0xff]
          %v1332 = vmul.f32 %v1310, %v1330
          %v1333 = vmul.f32 %v1312, %v1331
          %v1334 = vsel %vm1056, %v1326, 0.0
          %1335 = vadd.xlane.f32.xlu0 %v1334
          %v1336 = vpop.xlane.xlu0 %1335
          %v1337 = vsel %vm1056, %v1328, 0.0
          %1338 = vadd.xlane.f32.xlu0 %v1337
          %v1339 = vpop.xlane.xlu0 %1338
          %v1340 = vadd.f32 %v1332, %v1336
          %v1341 = vadd.f32 %v1333, %v1339
          %1342 = vst.msk [vmem:[%s1329] sm:$0xff] %vm1099, %v1340
          %1343 = vst.msk [vmem:[%s1329 + $0x8] sm:$0xff] %vm1099, %v1341
          %1344 = vst.msk [vmem:[%s1296] sm:$0xff] %vm1099, %v1305
          %1345 = vst.msk [vmem:[%s1296 + $0x8] sm:$0xff] %vm1099, %v1306
          %1348 = vrot.lane.b32.xlu0 %v953, 64
          %v1349 = vpop.permute.xlu0 %1348
          %1350 = vrot.lane.b32.xlu0 %v954, 64
          %v1351 = vpop.permute.xlu0 %1350
          %v1355 = vsel %vm1056, %v1326, 0
          %v1358 = vsel %vm1056, %v1328, 0
          %1360 = vmatprep.subr.mxu0 0.0
          %1361 = vmatpush1.msra.mxu0 %v1349
          %1362 = vmatprep.subr.mxu0 0.0
          %1363 = vmatpush1.msra.mxu0 %v1351
          %1364 = vmatprep.subr.mxu0 0.0
          %1365 = vmatpush1.msra.mxu0 0.0
          %1366 = vmatprep.subr.mxu0 0.0
          %1367 = vmatpush1.msra.mxu0 0.0
          %1368 = vmatprep.subr.mxu0 0.0
          %1369 = vmatpush1.msra.mxu0 0.0
          %1370 = vmatprep.subr.mxu0 0.0
          %1371 = vmatpush1.msra.mxu0 0.0
          %1372 = vmatprep.subr.mxu0 0.0
          %1373 = vmatpush1.msra.mxu0 0.0
          %1374 = vmatprep.subr.mxu0 0.0
          %1375 = vmatpush1.msra.mxu0 0.0
          %1376 = vmatprep.subr.mxu0 0.0
          %1377 = vmatpush1.msra.mxu0 0.0
          %1378 = vmatprep.subr.mxu0 0.0
          %1379 = vmatpush1.msra.mxu0 0.0
          %1380 = vmatprep.subr.mxu0 0.0
          %1381 = vmatpush1.msra.mxu0 0.0
          %1382 = vmatprep.subr.mxu0 0.0
          %1383 = vmatpush1.msra.mxu0 0.0
          %1384 = vmatprep.subr.mxu0 0.0
          %1385 = vmatpush1.msra.mxu0 0.0
          %1386 = vmatprep.subr.mxu0 0.0
          %1387 = vmatpush1.msra.mxu0 0.0
          %1388 = vmatprep.subr.mxu0 0.0
          %1389 = vmatpush1.msra.mxu0 0.0
          %1390 = vmatprep.subr.mxu0 0.0
          %1391 = vmatpush1.msra.mxu0 0.0
          %1392 = vmatprep.subr.mxu0 0.0
          %1393 = vmatpush1.msra.mxu0 0.0
          %1394 = vmatprep.subr.mxu0 0.0
          %1395 = vmatpush1.msra.mxu0 0.0
          %1396 = vmatprep.subr.mxu0 0.0
          %1397 = vmatpush1.msra.mxu0 0.0
          %1398 = vmatprep.subr.mxu0 0.0
          %1399 = vmatpush1.msra.mxu0 0.0
          %1400 = vmatprep.subr.mxu0 0.0
          %1401 = vmatpush1.msra.mxu0 0.0
          %1402 = vmatprep.subr.mxu0 0.0
          %1403 = vmatpush1.msra.mxu0 0.0
          %1404 = vmatprep.subr.mxu0 0.0
          %1405 = vmatpush1.msra.mxu0 0.0
          %1406 = vmatprep.subr.mxu0 0.0
          %1407 = vmatpush1.msra.mxu0 0.0
          %1408 = vmatprep.subr.mxu0 0.0
          %1409 = vmatpush1.msra.mxu0 0.0
          %1410 = vmatprep.subr.mxu0 0.0
          %1411 = vmatpush1.msra.mxu0 0.0
          %1412 = vmatprep.subr.mxu0 0.0
          %1413 = vmatpush1.msra.mxu0 0.0
          %1414 = vmatprep.subr.mxu0 0.0
          %1415 = vmatpush1.msra.mxu0 0.0
          %1416 = vmatprep.subr.mxu0 0.0
          %1417 = vmatpush1.msra.mxu0 0.0
          %1418 = vmatprep.subr.mxu0 0.0
          %1419 = vmatpush1.msra.mxu0 0.0
          %1420 = vmatprep.subr.mxu0 0.0
          %1421 = vmatpush1.msra.mxu0 0.0
          %1422 = vmatprep.subr.mxu0 0.0
          %1423 = vmatpush1.msra.mxu0 0.0
          %1424 = vmatprep.mubr.f32.mxu0 0.0
          %1425 = vmatmul.mubr.f32.gmra.mrb[0].mxu0 %v1355
          %v1426 = vpop.f32.mrb[0].mxu0
          %v1427 = vadd.f32 0.0, %v1426
          %v1428 = vpop.f32.mrb[0].mxu0
          %1429 = vmatprep.mubr.f32.mxu0 0.0
          %1430 = vmatmul.mubr.f32.gmra.mrb[0].mxu0 %v1358
          %v1431 = vpop.f32.mrb[0].mxu0
          %v1432 = vadd.f32 0.0, %v1431
          %v1433 = vpop.f32.mrb[0].mxu0
          %1434 = vdwg.mxu0
          %v1435 = vld [vmem:[#allocation4] sm:$0xff]
          %v1436 = vld [vmem:[#allocation4 + $0x8] sm:$0xff]
          %1438 = vset.pattern.permute.xlu0 0
          %1439 = vperm.xlu0 %1438, %v1310
          %v1440 = vpop.permute.xlu0 %1439
          %1443 = vset.pattern.permute.xlu0 0
          %1444 = vperm.xlu0 %1443, %v1312
          %v1445 = vpop.permute.xlu0 %1444
          %v1447 = vmul.f32 %v1440, %v1435
          %v1448 = vmul.f32 %v1445, %v1436
          %1451 = vrot.lane.b32.xlu0 %v1427, 64
          %v1452 = vpop.permute.xlu0 %1451
          %1453 = vrot.lane.b32.xlu0 %v1432, 64
          %v1454 = vpop.permute.xlu0 %1453
          %v1457 = vadd.f32 %v1447, %v1452
          %v1458 = vadd.f32 %v1448, %v1454
          %vm1459 = vcmask 1048064
          %1460 = vst.msk [vmem:[#allocation4] sm:$0xff] %vm1459, %v1457
          %1461 = vst.msk [vmem:[#allocation4 + $0x8] sm:$0xff] %vm1459, %v1458
          %v1462 = vld [vmem:[#allocation3] sm:$0xff]
          %v1463 = vld [vmem:[#allocation3 + $0x8] sm:$0xff]
          %v1464 = vrcp.pop %v1462
          %v1465 = vrcp.pop %v1463
          %v1466 = vld [vmem:[#allocation4] sm:$0xff]
          %v1467 = vld [vmem:[#allocation4 + $0x8] sm:$0xff]
          %1469 = vset.pattern.permute.xlu0 0
          %1470 = vperm.xlu0 %1469, %v1464
          %v1471 = vpop.permute.xlu0 %1470
          %1474 = vset.pattern.permute.xlu0 0
          %1475 = vperm.xlu0 %1474, %v1465
          %v1476 = vpop.permute.xlu0 %1475
          %v1478 = vmul.f32 %v1466, %v1471
          %v1479 = vmul.f32 %v1467, %v1476
          %1480 = vst.msk [vmem:[%s422] sm:$0xff] %vm964, %v1478
          %1481 = vst.msk [vmem:[%s422 + $0x8] sm:$0xff] %vm964, %v1479
          %v1482 = vld [vmem:[%s1329] sm:$0xff]
          %v1483 = vld [vmem:[%s1329 + $0x8] sm:$0xff]
          %v1484 = vrcp.pop %v1482
          %v1485 = vrcp.pop %v1483
          %v1486 = vld [vmem:[#allocation4] sm:$0xff]
          %v1487 = vld [vmem:[#allocation4 + $0x8] sm:$0xff]
          %1489 = vset.pattern.permute.xlu0 0
          %1490 = vperm.xlu0 %1489, %v1484
          %v1491 = vpop.permute.xlu0 %1490
          %1494 = vset.pattern.permute.xlu0 0
          %1495 = vperm.xlu0 %1494, %v1485
          %v1496 = vpop.permute.xlu0 %1495
          %v1498 = vmul.f32 %v1486, %v1491
          %v1499 = vmul.f32 %v1487, %v1496
          %1500 = vst.msk [vmem:[%s422] sm:$0xff] %vm1459, %v1498
          %1501 = vst.msk [vmem:[%s422 + $0x8] sm:$0xff] %vm1459, %v1499
        $region158: #{causal_self_attention.4} parent=133 // pred_fallthru
          _
        %s1502 = smul.u32 2, %s22
        %p1503 = scmp.lt.s32.totalorder %s20, 1
        %s1504 = scalar_select %p1503, %s20, 1
        %p1505 = scmp.lt.s32.totalorder %s1502, 1
        %s1506 = scalar_select %p1505, %s1502, 1
        %p1507 = scmp.lt.s32.totalorder %s21, 0
        %s1508 = scalar_select %p1507, %s21, 0
        %s1509 = sadd.s32 %s1508, %s1506
        %s1510 = smul.addr %s1504, 2
        %s1511 = sadd.s32 %s1509, %s1510
        %s1512 = smul.addr %s1511, 8
        %s1513 = scalar_lea.vmem %s3, %s1512
        // Predicated region
        $region159: #{causal_self_attention.4} parent=133 // pred_check
          %p1514 = pneg %p164
        $region160: #{causal_self_attention.4} parent=133 // pred_check_branch
          %1516 = sbr.rel (%p1514) target = $region162
        $region161: #{causal_self_attention.4} parent=133 // pred_region
          %s1517 = smul.u32 2, %s22
        $region162: #{causal_self_attention.4} parent=133 // pred_fallthru
          _
      $region134: #{causal_self_attention.4} parent=5 // pred_fallthru
        _
      %p1518 = scmp.le.s32.totalorder 2, %s9
      // Predicated region
      $region163: #{causal_self_attention.4} parent=5 // pred_check
        %p1519 = pneg %p1518
      $region164: #{causal_self_attention.4} parent=5 // pred_check_branch
        %1521 = sbr.rel (%p1519) target = $region166
      $region165: #{causal_self_attention.4} parent=5 // pred_region
        %s1522 = ssub.s32 %s9, 2
        // Predicated region
        $region167: #{causal_self_attention.4} parent=165 // pred_check
          %p1523 = pneg %p170
        $region168: #{causal_self_attention.4} parent=165 // pred_check_branch
          %1525 = sbr.rel (%p1523) target = $region170
        $region169: #{causal_self_attention.4} parent=165 // pred_region
          %s1526 = smul.u32 2, %s26
          %p1527 = scmp.lt.s32.totalorder %s24, 1
          %s1528 = scalar_select %p1527, %s24, 1
          %p1529 = scmp.lt.s32.totalorder %s1526, 1
          %s1530 = scalar_select %p1529, %s1526, 1
          %p1531 = scmp.lt.s32.totalorder %s25, 0
          %s1532 = scalar_select %p1531, %s25, 0
          %s1533 = sadd.s32 %s1532, %s1530
          %s1534 = smul.addr %s1528, 2
          %s1535 = sadd.s32 %s1533, %s1534
          %s1536 = smul.addr %s1535, 8
          %s1537 = scalar_lea.vmem %s3, %s1536
        $region170: #{causal_self_attention.4} parent=165 // pred_fallthru
          _
      $region166: #{causal_self_attention.4} parent=5 // pred_fallthru
        _
    $region6: #{causal_self_attention.4} parent=1 // loop_footer
      %s13 = sadd.s32 1, %s9
    $region7: #{causal_self_attention.4} parent=1 // loop_footer_branch
      %8 = sbr.rel target = $region3
    $region8: #{causal_self_attention.4} parent=1 // loop_exit
      _

</llo_original>
